<compile_context>
chip_gen: v6e
topology: v6e:2x2x1
jax: 0.10.0
libtpu: 0.0.40
codegen_flags: <defaults>
</compile_context>

<pallas_src>
import functools

import jax
import jax.numpy as jnp
import numpy as np
from jax.experimental import pallas as pl
from jax.experimental.pallas import tpu as pltpu


# ----------------------------------------------------------------------------
# 3x3 SAME conv of (C_in, H*W) activations via per-tap MXU accumulation.
# ----------------------------------------------------------------------------
def _conv3x3_taps(act_f32, mask_rows, w_ref, b_ref, H, W):
    """act_f32   : (C_in, H*W) f32 activations (spatial flattened on lanes).
    mask_rows : list of 8 (1, H*W) f32 border-validity masks (taps in
                (ky, kx) order, center tap skipped), hoisted by the caller.
    w_ref     : (9, C_out, C_in) bf16 weight taps.
    b_ref     : (C_out, 1) f32 bias.
    """
    HW = H * W
    acc = None
    m_idx = 0
    for ky in range(3):
        for kx in range(3):
            dy, dx = ky - 1, kx - 1
            delta = dy * W + dx                         # static python int
            t = ky * 3 + kx
            if delta == 0:
                tap = act_f32
            else:
                # TODO(synk): when W % 128 == 0, decompose into roll(+/-W)
                # (near-free vreg re-indexing) + shared +/-1 lane rolls, and
                # roll in bf16 to halve XLU traffic.
                tap = pltpu.roll(act_f32, (-delta) % HW, axis=1)
            if dy != 0 or dx != 0:
                tap = tap * mask_rows[m_idx]            # zero the SAME-pad halo
                m_idx += 1
            contrib = jnp.dot(w_ref[t], tap.astype(jnp.bfloat16),
                              preferred_element_type=jnp.float32)
            acc = contrib if acc is None else acc + contrib
    return acc + b_ref[...]


# ----------------------------------------------------------------------------
# Fully fused ResBlock kernel: one batch element per grid step.
# ----------------------------------------------------------------------------
def _resblock_kernel(x_ref, masks_ref, w1_ref, b1_ref, w2_ref, b2_ref,
                     m1_ref, m2_ref, out_ref, *, H, W):
    x = x_ref[0].astype(jnp.float32)                    # (C, H*W), lane-dense
    masks = masks_ref[...]                              # (8, H*W) f32
    # Hoisted once; reused by both convs (no duplicated compares/broadcasts).
    mask_rows = [masks[i:i + 1, :] for i in range(8)]

    # conv1 (3x3 SAME, bias) + ReLU
    h = _conv3x3_taps(x, mask_rows, w1_ref, b1_ref, H, W)
    h = jnp.maximum(h, 0.0)

    # conv2 (3x3 SAME, bias)
    h = _conv3x3_taps(h, mask_rows, w2_ref, b2_ref, H, W)

    # channel attention: avg & max pooled vectors batched as the two columns
    # of one (C, 2) matrix -> one matmul per shared-MLP layer.
    avg = jnp.mean(h, axis=1, keepdims=True)            # (C, 1)
    mx = jnp.max(h, axis=1, keepdims=True)              # (C, 1)
    pooled = jnp.concatenate([avg, mx], axis=1).astype(jnp.bfloat16)   # (C, 2)
    hid = jnp.dot(m1_ref[...], pooled, preferred_element_type=jnp.float32)
    hid = jnp.maximum(hid, 0.0).astype(jnp.bfloat16)    # (C//4, 2)
    gates = jnp.dot(m2_ref[...], hid, preferred_element_type=jnp.float32)
    gate = jax.nn.sigmoid(gates[:, 0:1] + gates[:, 1:2])               # (C, 1)

    # gate, residual add, final ReLU (pre_actv=False)
    out_ref[0] = jnp.maximum(h * gate + x, 0.0).astype(out_ref.dtype)


# ----------------------------------------------------------------------------
# Host-side helpers.
# ----------------------------------------------------------------------------
def _vmem_limit_bytes():
    # Generation-aware scoped-VMEM limit: v5e/v6e have 128 MiB/TC, v7x 64 MiB.
    try:
        cap = pltpu.get_tpu_info().vmem_capacity_bytes
    except Exception:
        cap = 64 * 1024 * 1024
    return max(32 * 1024 * 1024, min((int(cap) * 3) // 4, 96 * 1024 * 1024))


def _border_masks(H, W):
    """(8, H*W) f32 validity masks for the 8 non-center 3x3 taps."""
    pos = np.arange(H * W)
    hh, ww = pos // W, pos % W
    rows = []
    for ky in range(3):
        for kx in range(3):
            dy, dx = ky - 1, kx - 1
            if dy == 0 and dx == 0:
                continue
            valid = np.ones(H * W, dtype=bool)
            if dy < 0:
                valid &= hh >= -dy
            if dy > 0:
                valid &= hh < H - dy
            if dx < 0:
                valid &= ww >= -dx
            if dx > 0:
                valid &= ww < W - dx
            rows.append(valid)
    return jnp.asarray(np.stack(rows).astype(np.float32))


# ----------------------------------------------------------------------------
# Public wrapper: NCHW in / NCHW out, drop-in for the PyTorch module.
# ----------------------------------------------------------------------------
def res_block_forward(x_nchw, params):
    N, C, H, W = x_nchw.shape
    HW = H * W
    Cr = params["mlp_w1"].shape[1]

    # Free (metadata-only) reshape: spatial dims flattened onto the lane axis.
    x2d = x_nchw.reshape(N, C, HW)

    # Conv weights as (9, C_out, C_in) bf16 taps; 1x1 MLP weights transposed
    # to the column orientation used in the kernel, also bf16 (MXU operands).
    # bf16 also halves the dead double-buffer VMEM of these grid-invariant
    # operands.
    w1t = jnp.transpose(params["w1"].reshape(9, C, C), (0, 2, 1)).astype(jnp.bfloat16)
    w2t = jnp.transpose(params["w2"].reshape(9, C, C), (0, 2, 1)).astype(jnp.bfloat16)
    b1 = params["b1"].reshape(C, 1).astype(jnp.float32)
    b2 = params["b2"].reshape(C, 1).astype(jnp.float32)
    m1t = jnp.transpose(params["mlp_w1"]).astype(jnp.bfloat16)     # (C//4, C)
    m2t = jnp.transpose(params["mlp_w2"]).astype(jnp.bfloat16)     # (C, C//4)
    masks = _border_masks(H, W)                                    # (8, HW)

    kernel = functools.partial(_resblock_kernel, H=H, W=W)
    # TODO(synk): if N == 1, add a second "parallel" grid axis (split output
    # channel rows) so both v7x TensorCores get work.
    # TODO(synk): for images too large for one resident (C, H*W) block, switch
    # to a row-tiled variant with an overlapping (halo) input BlockSpec and a
    # small second pass / cross-tile accumulator for the CA pooling.
    out2d = pl.pallas_call(
        kernel,
        out_shape=jax.ShapeDtypeStruct((N, C, HW), x_nchw.dtype),
        grid_spec=pltpu.PrefetchScalarGridSpec(
            num_scalar_prefetch=0,
            grid=(N,),
            in_specs=[
                pl.BlockSpec((1, C, HW), lambda n: (n, 0, 0)),
                pl.BlockSpec((8, HW), lambda n: (0, 0)),
                pl.BlockSpec((9, C, C), lambda n: (0, 0, 0)),
                pl.BlockSpec((C, 1), lambda n: (0, 0)),
                pl.BlockSpec((9, C, C), lambda n: (0, 0, 0)),
                pl.BlockSpec((C, 1), lambda n: (0, 0)),
                pl.BlockSpec((Cr, C), lambda n: (0, 0)),
                pl.BlockSpec((C, Cr), lambda n: (0, 0)),
            ],
            out_specs=pl.BlockSpec((1, C, HW), lambda n: (n, 0, 0)),
        ),
        compiler_params=pltpu.CompilerParams(
            dimension_semantics=("parallel",),
            vmem_limit_bytes=_vmem_limit_bytes(),
        ),
    )(x2d, masks, w1t, b1, w2t, b2, m1t, m2t)

    return out2d.reshape(N, C, H, W)                               # free reshape


def init_params(key, channels, ratio=4):
    cr = channels // ratio
    ks = jax.random.split(key, 6)
    return {
        "w1": 0.1 * jax.random.normal(ks[0], (3, 3, channels, channels), jnp.float32),
        "b1": 0.1 * jax.random.normal(ks[1], (channels,), jnp.float32),
        "w2": 0.1 * jax.random.normal(ks[2], (3, 3, channels, channels), jnp.float32),
        "b2": 0.1 * jax.random.normal(ks[3], (channels,), jnp.float32),
        # shared_mlp 1x1 convs (bias=False), stored as (in, out) matrices
        "mlp_w1": 0.1 * jax.random.normal(ks[4], (channels, cr), jnp.float32),
        "mlp_w2": 0.1 * jax.random.normal(ks[5], (cr, channels), jnp.float32),
    }


# Pure-JAX reference (NCHW) used only for the correctness sanity check.
def _ref_forward_nchw(x, p):
    dn = jax.lax.conv_dimension_numbers(x.shape, p["w1"].shape,
                                        ("NCHW", "HWIO", "NCHW"))
    h = jax.lax.conv_general_dilated(x, p["w1"], (1, 1), "SAME",
                                     dimension_numbers=dn)
    h = h + p["b1"][None, :, None, None]
    h = jnp.maximum(h, 0.0)
    h = jax.lax.conv_general_dilated(h, p["w2"], (1, 1), "SAME",
                                     dimension_numbers=dn)
    h = h + p["b2"][None, :, None, None]
    avg = jnp.mean(h, axis=(2, 3))
    mx = jnp.max(h, axis=(2, 3))

    def mlp(v):
        return jnp.maximum(v @ p["mlp_w1"], 0.0) @ p["mlp_w2"]

    gate = jax.nn.sigmoid(mlp(avg) + mlp(mx))[:, :, None, None]
    return jnp.maximum(h * gate + x, 0.0)


if __name__ == "__main__":
    # NOTE: production tuning should use C as a multiple of 128 (MXU-bound
    # regime); this small config exercises correctness, not MXU efficiency.
    N, C, H, W = 2, 8, 16, 16          # channels=8 so channels//ratio = 2
    key = jax.random.PRNGKey(0)
    kx_, kp = jax.random.split(key)
    x_nchw = jax.random.normal(kx_, (N, C, H, W), jnp.float32)
    params = init_params(kp, C)

    fwd = jax.jit(res_block_forward)
    out = jax.block_until_ready(fwd(x_nchw, params))

    ref = _ref_forward_nchw(x_nchw, params)
    np.testing.assert_allclose(np.asarray(out), np.asarray(ref),
                               rtol=3e-2, atol=3e-2)
    print("KERNEL_OK")
</pallas_src>

<mosaic_0001>
module attributes {stable_mosaic.version = 11 : i64} {
  func.func @_resblock_kernel(%arg0: i32, %arg1: memref<1x8x256xf32, #tpu.memory_space<vmem>>, %arg2: memref<8x256xf32, #tpu.memory_space<vmem>>, %arg3: memref<9x8x8xbf16, #tpu.memory_space<vmem>>, %arg4: memref<8x1xf32, #tpu.memory_space<vmem>>, %arg5: memref<9x8x8xbf16, #tpu.memory_space<vmem>>, %arg6: memref<8x1xf32, #tpu.memory_space<vmem>>, %arg7: memref<2x8xbf16, #tpu.memory_space<vmem>>, %arg8: memref<8x2xbf16, #tpu.memory_space<vmem>>, %arg9: memref<1x8x256xf32, #tpu.memory_space<vmem>>) attributes {dimension_semantics = [#tpu.dimension_semantics<parallel>], iteration_bounds = array<i64: 2>, scalar_prefetch = 0 : i64, scratch_operands = 0 : i64, tpu.core_type = #tpu.core_type<tc>, window_params = [{transform_indices = @transform_0, window_bounds = array<i64: 1, 8, 256>}, {pipeline_mode = #tpu.pipeline_mode<synchronous>, transform_indices = @transform_1, window_bounds = array<i64: 8, 256>}, {pipeline_mode = #tpu.pipeline_mode<synchronous>, transform_indices = @transform_2, window_bounds = array<i64: 9, 8, 8>}, {pipeline_mode = #tpu.pipeline_mode<synchronous>, transform_indices = @transform_3, window_bounds = array<i64: 8, 1>}, {pipeline_mode = #tpu.pipeline_mode<synchronous>, transform_indices = @transform_4, window_bounds = array<i64: 9, 8, 8>}, {pipeline_mode = #tpu.pipeline_mode<synchronous>, transform_indices = @transform_5, window_bounds = array<i64: 8, 1>}, {pipeline_mode = #tpu.pipeline_mode<synchronous>, transform_indices = @transform_6, window_bounds = array<i64: 2, 8>}, {pipeline_mode = #tpu.pipeline_mode<synchronous>, transform_indices = @transform_7, window_bounds = array<i64: 8, 2>}, {transform_indices = @transform_8, window_bounds = array<i64: 1, 8, 256>}]} {
    %c0 = arith.constant 0 : index
    %c0_0 = arith.constant 0 : index
    %c0_1 = arith.constant 0 : index
    %0 = vector.load %arg1[%c0, %c0_0, %c0_1] : memref<1x8x256xf32, #tpu.memory_space<vmem>>, vector<1x8x256xf32>
    %1 = vector.shape_cast %0 : vector<1x8x256xf32> to vector<8x256xf32>
    %c0_2 = arith.constant 0 : index
    %c0_3 = arith.constant 0 : index
    %2 = vector.load %arg2[%c0_2, %c0_3] : memref<8x256xf32, #tpu.memory_space<vmem>>, vector<8x256xf32>
    %3 = vector.extract_strided_slice %2 {offsets = [0, 0], sizes = [1, 256], strides = [1, 1]} : vector<8x256xf32> to vector<1x256xf32>
    %4 = vector.extract_strided_slice %2 {offsets = [1, 0], sizes = [1, 256], strides = [1, 1]} : vector<8x256xf32> to vector<1x256xf32>
    %5 = vector.extract_strided_slice %2 {offsets = [2, 0], sizes = [1, 256], strides = [1, 1]} : vector<8x256xf32> to vector<1x256xf32>
    %6 = vector.extract_strided_slice %2 {offsets = [3, 0], sizes = [1, 256], strides = [1, 1]} : vector<8x256xf32> to vector<1x256xf32>
    %7 = vector.extract_strided_slice %2 {offsets = [4, 0], sizes = [1, 256], strides = [1, 1]} : vector<8x256xf32> to vector<1x256xf32>
    %8 = vector.extract_strided_slice %2 {offsets = [5, 0], sizes = [1, 256], strides = [1, 1]} : vector<8x256xf32> to vector<1x256xf32>
    %9 = vector.extract_strided_slice %2 {offsets = [6, 0], sizes = [1, 256], strides = [1, 1]} : vector<8x256xf32> to vector<1x256xf32>
    %10 = vector.extract_strided_slice %2 {offsets = [7, 0], sizes = [1, 256], strides = [1, 1]} : vector<8x256xf32> to vector<1x256xf32>
    %c17_i32 = arith.constant 17 : i32
    %11 = tpu.dynamic_rotate %1 by %c17_i32 dim 1 : vector<8x256xf32>, i32 -> vector<8x256xf32>
    %12 = vector.broadcast %3 : vector<1x256xf32> to vector<8x256xf32>
    %13 = arith.mulf %11, %12 : vector<8x256xf32>
    %c0_4 = arith.constant 0 : index
    %c0_5 = arith.constant 0 : index
    %c0_6 = arith.constant 0 : index
    %14 = vector.load %arg3[%c0_4, %c0_5, %c0_6] : memref<9x8x8xbf16, #tpu.memory_space<vmem>>, vector<1x8x8xbf16>
    %15 = vector.shape_cast %14 : vector<1x8x8xbf16> to vector<8x8xbf16>
    %16 = arith.truncf %13 : vector<8x256xf32> to vector<8x256xbf16>
    %cst = arith.constant dense<0.000000e+00> : vector<8x256xf32>
    %17 = tpu.matmul %15, %16, %cst {dimension_numbers = #tpu.dot_dimension_numbers<[1], [0], [0], [1], [0, 0, 1, 1], [], []>} : vector<8x8xbf16>, vector<8x256xbf16>, vector<8x256xf32> -> vector<8x256xf32>
    %c16_i32 = arith.constant 16 : i32
    %18 = tpu.dynamic_rotate %1 by %c16_i32 dim 1 : vector<8x256xf32>, i32 -> vector<8x256xf32>
    %19 = vector.broadcast %4 : vector<1x256xf32> to vector<8x256xf32>
    %20 = arith.mulf %18, %19 : vector<8x256xf32>
    %c1 = arith.constant 1 : index
    %c0_7 = arith.constant 0 : index
    %c0_8 = arith.constant 0 : index
    %21 = vector.load %arg3[%c1, %c0_7, %c0_8] : memref<9x8x8xbf16, #tpu.memory_space<vmem>>, vector<1x8x8xbf16>
    %22 = vector.shape_cast %21 : vector<1x8x8xbf16> to vector<8x8xbf16>
    %23 = arith.truncf %20 : vector<8x256xf32> to vector<8x256xbf16>
    %cst_9 = arith.constant dense<0.000000e+00> : vector<8x256xf32>
    %24 = tpu.matmul %22, %23, %cst_9 {dimension_numbers = #tpu.dot_dimension_numbers<[1], [0], [0], [1], [0, 0, 1, 1], [], []>} : vector<8x8xbf16>, vector<8x256xbf16>, vector<8x256xf32> -> vector<8x256xf32>
    %25 = arith.addf %17, %24 : vector<8x256xf32>
    %c15_i32 = arith.constant 15 : i32
    %26 = tpu.dynamic_rotate %1 by %c15_i32 dim 1 : vector<8x256xf32>, i32 -> vector<8x256xf32>
    %27 = vector.broadcast %5 : vector<1x256xf32> to vector<8x256xf32>
    %28 = arith.mulf %26, %27 : vector<8x256xf32>
    %c2 = arith.constant 2 : index
    %c0_10 = arith.constant 0 : index
    %c0_11 = arith.constant 0 : index
    %29 = vector.load %arg3[%c2, %c0_10, %c0_11] : memref<9x8x8xbf16, #tpu.memory_space<vmem>>, vector<1x8x8xbf16>
    %30 = vector.shape_cast %29 : vector<1x8x8xbf16> to vector<8x8xbf16>
    %31 = arith.truncf %28 : vector<8x256xf32> to vector<8x256xbf16>
    %cst_12 = arith.constant dense<0.000000e+00> : vector<8x256xf32>
    %32 = tpu.matmul %30, %31, %cst_12 {dimension_numbers = #tpu.dot_dimension_numbers<[1], [0], [0], [1], [0, 0, 1, 1], [], []>} : vector<8x8xbf16>, vector<8x256xbf16>, vector<8x256xf32> -> vector<8x256xf32>
    %33 = arith.addf %25, %32 : vector<8x256xf32>
    %c1_i32 = arith.constant 1 : i32
    %34 = tpu.dynamic_rotate %1 by %c1_i32 dim 1 : vector<8x256xf32>, i32 -> vector<8x256xf32>
    %35 = vector.broadcast %6 : vector<1x256xf32> to vector<8x256xf32>
    %36 = arith.mulf %34, %35 : vector<8x256xf32>
    %c3 = arith.constant 3 : index
    %c0_13 = arith.constant 0 : index
    %c0_14 = arith.constant 0 : index
    %37 = vector.load %arg3[%c3, %c0_13, %c0_14] : memref<9x8x8xbf16, #tpu.memory_space<vmem>>, vector<1x8x8xbf16>
    %38 = vector.shape_cast %37 : vector<1x8x8xbf16> to vector<8x8xbf16>
    %39 = arith.truncf %36 : vector<8x256xf32> to vector<8x256xbf16>
    %cst_15 = arith.constant dense<0.000000e+00> : vector<8x256xf32>
    %40 = tpu.matmul %38, %39, %cst_15 {dimension_numbers = #tpu.dot_dimension_numbers<[1], [0], [0], [1], [0, 0, 1, 1], [], []>} : vector<8x8xbf16>, vector<8x256xbf16>, vector<8x256xf32> -> vector<8x256xf32>
    %41 = arith.addf %33, %40 : vector<8x256xf32>
    %c4 = arith.constant 4 : index
    %c0_16 = arith.constant 0 : index
    %c0_17 = arith.constant 0 : index
    %42 = vector.load %arg3[%c4, %c0_16, %c0_17] : memref<9x8x8xbf16, #tpu.memory_space<vmem>>, vector<1x8x8xbf16>
    %43 = vector.shape_cast %42 : vector<1x8x8xbf16> to vector<8x8xbf16>
    %44 = arith.truncf %1 : vector<8x256xf32> to vector<8x256xbf16>
    %cst_18 = arith.constant dense<0.000000e+00> : vector<8x256xf32>
    %45 = tpu.matmul %43, %44, %cst_18 {dimension_numbers = #tpu.dot_dimension_numbers<[1], [0], [0], [1], [0, 0, 1, 1], [], []>} : vector<8x8xbf16>, vector<8x256xbf16>, vector<8x256xf32> -> vector<8x256xf32>
    %46 = arith.addf %41, %45 : vector<8x256xf32>
    %c255_i32 = arith.constant 255 : i32
    %47 = tpu.dynamic_rotate %1 by %c255_i32 dim 1 : vector<8x256xf32>, i32 -> vector<8x256xf32>
    %48 = vector.broadcast %7 : vector<1x256xf32> to vector<8x256xf32>
    %49 = arith.mulf %47, %48 : vector<8x256xf32>
    %c5 = arith.constant 5 : index
    %c0_19 = arith.constant 0 : index
    %c0_20 = arith.constant 0 : index
    %50 = vector.load %arg3[%c5, %c0_19, %c0_20] : memref<9x8x8xbf16, #tpu.memory_space<vmem>>, vector<1x8x8xbf16>
    %51 = vector.shape_cast %50 : vector<1x8x8xbf16> to vector<8x8xbf16>
    %52 = arith.truncf %49 : vector<8x256xf32> to vector<8x256xbf16>
    %cst_21 = arith.constant dense<0.000000e+00> : vector<8x256xf32>
    %53 = tpu.matmul %51, %52, %cst_21 {dimension_numbers = #tpu.dot_dimension_numbers<[1], [0], [0], [1], [0, 0, 1, 1], [], []>} : vector<8x8xbf16>, vector<8x256xbf16>, vector<8x256xf32> -> vector<8x256xf32>
    %54 = arith.addf %46, %53 : vector<8x256xf32>
    %c241_i32 = arith.constant 241 : i32
    %55 = tpu.dynamic_rotate %1 by %c241_i32 dim 1 : vector<8x256xf32>, i32 -> vector<8x256xf32>
    %56 = vector.broadcast %8 : vector<1x256xf32> to vector<8x256xf32>
    %57 = arith.mulf %55, %56 : vector<8x256xf32>
    %c6 = arith.constant 6 : index
    %c0_22 = arith.constant 0 : index
    %c0_23 = arith.constant 0 : index
    %58 = vector.load %arg3[%c6, %c0_22, %c0_23] : memref<9x8x8xbf16, #tpu.memory_space<vmem>>, vector<1x8x8xbf16>
    %59 = vector.shape_cast %58 : vector<1x8x8xbf16> to vector<8x8xbf16>
    %60 = arith.truncf %57 : vector<8x256xf32> to vector<8x256xbf16>
    %cst_24 = arith.constant dense<0.000000e+00> : vector<8x256xf32>
    %61 = tpu.matmul %59, %60, %cst_24 {dimension_numbers = #tpu.dot_dimension_numbers<[1], [0], [0], [1], [0, 0, 1, 1], [], []>} : vector<8x8xbf16>, vector<8x256xbf16>, vector<8x256xf32> -> vector<8x256xf32>
    %62 = arith.addf %54, %61 : vector<8x256xf32>
    %c240_i32 = arith.constant 240 : i32
    %63 = tpu.dynamic_rotate %1 by %c240_i32 dim 1 : vector<8x256xf32>, i32 -> vector<8x256xf32>
    %64 = vector.broadcast %9 : vector<1x256xf32> to vector<8x256xf32>
    %65 = arith.mulf %63, %64 : vector<8x256xf32>
    %c7 = arith.constant 7 : index
    %c0_25 = arith.constant 0 : index
    %c0_26 = arith.constant 0 : index
    %66 = vector.load %arg3[%c7, %c0_25, %c0_26] : memref<9x8x8xbf16, #tpu.memory_space<vmem>>, vector<1x8x8xbf16>
    %67 = vector.shape_cast %66 : vector<1x8x8xbf16> to vector<8x8xbf16>
    %68 = arith.truncf %65 : vector<8x256xf32> to vector<8x256xbf16>
    %cst_27 = arith.constant dense<0.000000e+00> : vector<8x256xf32>
    %69 = tpu.matmul %67, %68, %cst_27 {dimension_numbers = #tpu.dot_dimension_numbers<[1], [0], [0], [1], [0, 0, 1, 1], [], []>} : vector<8x8xbf16>, vector<8x256xbf16>, vector<8x256xf32> -> vector<8x256xf32>
    %70 = arith.addf %62, %69 : vector<8x256xf32>
    %c239_i32 = arith.constant 239 : i32
    %71 = tpu.dynamic_rotate %1 by %c239_i32 dim 1 : vector<8x256xf32>, i32 -> vector<8x256xf32>
    %72 = vector.broadcast %10 : vector<1x256xf32> to vector<8x256xf32>
    %73 = arith.mulf %71, %72 : vector<8x256xf32>
    %c8 = arith.constant 8 : index
    %c0_28 = arith.constant 0 : index
    %c0_29 = arith.constant 0 : index
    %74 = vector.load %arg3[%c8, %c0_28, %c0_29] : memref<9x8x8xbf16, #tpu.memory_space<vmem>>, vector<1x8x8xbf16>
    %75 = vector.shape_cast %74 : vector<1x8x8xbf16> to vector<8x8xbf16>
    %76 = arith.truncf %73 : vector<8x256xf32> to vector<8x256xbf16>
    %cst_30 = arith.constant dense<0.000000e+00> : vector<8x256xf32>
    %77 = tpu.matmul %75, %76, %cst_30 {dimension_numbers = #tpu.dot_dimension_numbers<[1], [0], [0], [1], [0, 0, 1, 1], [], []>} : vector<8x8xbf16>, vector<8x256xbf16>, vector<8x256xf32> -> vector<8x256xf32>
    %78 = arith.addf %70, %77 : vector<8x256xf32>
    %c0_31 = arith.constant 0 : index
    %c0_32 = arith.constant 0 : index
    %79 = vector.load %arg4[%c0_31, %c0_32] : memref<8x1xf32, #tpu.memory_space<vmem>>, vector<8x1xf32>
    %80 = vector.broadcast %79 : vector<8x1xf32> to vector<8x256xf32>
    %81 = arith.addf %78, %80 : vector<8x256xf32>
    %cst_33 = arith.constant 0.000000e+00 : f32
    %82 = vector.broadcast %cst_33 : f32 to vector<8x256xf32>
    %83 = arith.maximumf %81, %82 : vector<8x256xf32>
    %c17_i32_34 = arith.constant 17 : i32
    %84 = tpu.dynamic_rotate %83 by %c17_i32_34 dim 1 : vector<8x256xf32>, i32 -> vector<8x256xf32>
    %85 = vector.broadcast %3 : vector<1x256xf32> to vector<8x256xf32>
    %86 = arith.mulf %84, %85 : vector<8x256xf32>
    %c0_35 = arith.constant 0 : index
    %c0_36 = arith.constant 0 : index
    %c0_37 = arith.constant 0 : index
    %87 = vector.load %arg5[%c0_35, %c0_36, %c0_37] : memref<9x8x8xbf16, #tpu.memory_space<vmem>>, vector<1x8x8xbf16>
    %88 = vector.shape_cast %87 : vector<1x8x8xbf16> to vector<8x8xbf16>
    %89 = arith.truncf %86 : vector<8x256xf32> to vector<8x256xbf16>
    %cst_38 = arith.constant dense<0.000000e+00> : vector<8x256xf32>
    %90 = tpu.matmul %88, %89, %cst_38 {dimension_numbers = #tpu.dot_dimension_numbers<[1], [0], [0], [1], [0, 0, 1, 1], [], []>} : vector<8x8xbf16>, vector<8x256xbf16>, vector<8x256xf32> -> vector<8x256xf32>
    %c16_i32_39 = arith.constant 16 : i32
    %91 = tpu.dynamic_rotate %83 by %c16_i32_39 dim 1 : vector<8x256xf32>, i32 -> vector<8x256xf32>
    %92 = vector.broadcast %4 : vector<1x256xf32> to vector<8x256xf32>
    %93 = arith.mulf %91, %92 : vector<8x256xf32>
    %c1_40 = arith.constant 1 : index
    %c0_41 = arith.constant 0 : index
    %c0_42 = arith.constant 0 : index
    %94 = vector.load %arg5[%c1_40, %c0_41, %c0_42] : memref<9x8x8xbf16, #tpu.memory_space<vmem>>, vector<1x8x8xbf16>
    %95 = vector.shape_cast %94 : vector<1x8x8xbf16> to vector<8x8xbf16>
    %96 = arith.truncf %93 : vector<8x256xf32> to vector<8x256xbf16>
    %cst_43 = arith.constant dense<0.000000e+00> : vector<8x256xf32>
    %97 = tpu.matmul %95, %96, %cst_43 {dimension_numbers = #tpu.dot_dimension_numbers<[1], [0], [0], [1], [0, 0, 1, 1], [], []>} : vector<8x8xbf16>, vector<8x256xbf16>, vector<8x256xf32> -> vector<8x256xf32>
    %98 = arith.addf %90, %97 : vector<8x256xf32>
    %c15_i32_44 = arith.constant 15 : i32
    %99 = tpu.dynamic_rotate %83 by %c15_i32_44 dim 1 : vector<8x256xf32>, i32 -> vector<8x256xf32>
    %100 = vector.broadcast %5 : vector<1x256xf32> to vector<8x256xf32>
    %101 = arith.mulf %99, %100 : vector<8x256xf32>
    %c2_45 = arith.constant 2 : index
    %c0_46 = arith.constant 0 : index
    %c0_47 = arith.constant 0 : index
    %102 = vector.load %arg5[%c2_45, %c0_46, %c0_47] : memref<9x8x8xbf16, #tpu.memory_space<vmem>>, vector<1x8x8xbf16>
    %103 = vector.shape_cast %102 : vector<1x8x8xbf16> to vector<8x8xbf16>
    %104 = arith.truncf %101 : vector<8x256xf32> to vector<8x256xbf16>
    %cst_48 = arith.constant dense<0.000000e+00> : vector<8x256xf32>
    %105 = tpu.matmul %103, %104, %cst_48 {dimension_numbers = #tpu.dot_dimension_numbers<[1], [0], [0], [1], [0, 0, 1, 1], [], []>} : vector<8x8xbf16>, vector<8x256xbf16>, vector<8x256xf32> -> vector<8x256xf32>
    %106 = arith.addf %98, %105 : vector<8x256xf32>
    %c1_i32_49 = arith.constant 1 : i32
    %107 = tpu.dynamic_rotate %83 by %c1_i32_49 dim 1 : vector<8x256xf32>, i32 -> vector<8x256xf32>
    %108 = vector.broadcast %6 : vector<1x256xf32> to vector<8x256xf32>
    %109 = arith.mulf %107, %108 : vector<8x256xf32>
    %c3_50 = arith.constant 3 : index
    %c0_51 = arith.constant 0 : index
    %c0_52 = arith.constant 0 : index
    %110 = vector.load %arg5[%c3_50, %c0_51, %c0_52] : memref<9x8x8xbf16, #tpu.memory_space<vmem>>, vector<1x8x8xbf16>
    %111 = vector.shape_cast %110 : vector<1x8x8xbf16> to vector<8x8xbf16>
    %112 = arith.truncf %109 : vector<8x256xf32> to vector<8x256xbf16>
    %cst_53 = arith.constant dense<0.000000e+00> : vector<8x256xf32>
    %113 = tpu.matmul %111, %112, %cst_53 {dimension_numbers = #tpu.dot_dimension_numbers<[1], [0], [0], [1], [0, 0, 1, 1], [], []>} : vector<8x8xbf16>, vector<8x256xbf16>, vector<8x256xf32> -> vector<8x256xf32>
    %114 = arith.addf %106, %113 : vector<8x256xf32>
    %c4_54 = arith.constant 4 : index
    %c0_55 = arith.constant 0 : index
    %c0_56 = arith.constant 0 : index
    %115 = vector.load %arg5[%c4_54, %c0_55, %c0_56] : memref<9x8x8xbf16, #tpu.memory_space<vmem>>, vector<1x8x8xbf16>
    %116 = vector.shape_cast %115 : vector<1x8x8xbf16> to vector<8x8xbf16>
    %117 = arith.truncf %83 : vector<8x256xf32> to vector<8x256xbf16>
    %cst_57 = arith.constant dense<0.000000e+00> : vector<8x256xf32>
    %118 = tpu.matmul %116, %117, %cst_57 {dimension_numbers = #tpu.dot_dimension_numbers<[1], [0], [0], [1], [0, 0, 1, 1], [], []>} : vector<8x8xbf16>, vector<8x256xbf16>, vector<8x256xf32> -> vector<8x256xf32>
    %119 = arith.addf %114, %118 : vector<8x256xf32>
    %c255_i32_58 = arith.constant 255 : i32
    %120 = tpu.dynamic_rotate %83 by %c255_i32_58 dim 1 : vector<8x256xf32>, i32 -> vector<8x256xf32>
    %121 = vector.broadcast %7 : vector<1x256xf32> to vector<8x256xf32>
    %122 = arith.mulf %120, %121 : vector<8x256xf32>
    %c5_59 = arith.constant 5 : index
    %c0_60 = arith.constant 0 : index
    %c0_61 = arith.constant 0 : index
    %123 = vector.load %arg5[%c5_59, %c0_60, %c0_61] : memref<9x8x8xbf16, #tpu.memory_space<vmem>>, vector<1x8x8xbf16>
    %124 = vector.shape_cast %123 : vector<1x8x8xbf16> to vector<8x8xbf16>
    %125 = arith.truncf %122 : vector<8x256xf32> to vector<8x256xbf16>
    %cst_62 = arith.constant dense<0.000000e+00> : vector<8x256xf32>
    %126 = tpu.matmul %124, %125, %cst_62 {dimension_numbers = #tpu.dot_dimension_numbers<[1], [0], [0], [1], [0, 0, 1, 1], [], []>} : vector<8x8xbf16>, vector<8x256xbf16>, vector<8x256xf32> -> vector<8x256xf32>
    %127 = arith.addf %119, %126 : vector<8x256xf32>
    %c241_i32_63 = arith.constant 241 : i32
    %128 = tpu.dynamic_rotate %83 by %c241_i32_63 dim 1 : vector<8x256xf32>, i32 -> vector<8x256xf32>
    %129 = vector.broadcast %8 : vector<1x256xf32> to vector<8x256xf32>
    %130 = arith.mulf %128, %129 : vector<8x256xf32>
    %c6_64 = arith.constant 6 : index
    %c0_65 = arith.constant 0 : index
    %c0_66 = arith.constant 0 : index
    %131 = vector.load %arg5[%c6_64, %c0_65, %c0_66] : memref<9x8x8xbf16, #tpu.memory_space<vmem>>, vector<1x8x8xbf16>
    %132 = vector.shape_cast %131 : vector<1x8x8xbf16> to vector<8x8xbf16>
    %133 = arith.truncf %130 : vector<8x256xf32> to vector<8x256xbf16>
    %cst_67 = arith.constant dense<0.000000e+00> : vector<8x256xf32>
    %134 = tpu.matmul %132, %133, %cst_67 {dimension_numbers = #tpu.dot_dimension_numbers<[1], [0], [0], [1], [0, 0, 1, 1], [], []>} : vector<8x8xbf16>, vector<8x256xbf16>, vector<8x256xf32> -> vector<8x256xf32>
    %135 = arith.addf %127, %134 : vector<8x256xf32>
    %c240_i32_68 = arith.constant 240 : i32
    %136 = tpu.dynamic_rotate %83 by %c240_i32_68 dim 1 : vector<8x256xf32>, i32 -> vector<8x256xf32>
    %137 = vector.broadcast %9 : vector<1x256xf32> to vector<8x256xf32>
    %138 = arith.mulf %136, %137 : vector<8x256xf32>
    %c7_69 = arith.constant 7 : index
    %c0_70 = arith.constant 0 : index
    %c0_71 = arith.constant 0 : index
    %139 = vector.load %arg5[%c7_69, %c0_70, %c0_71] : memref<9x8x8xbf16, #tpu.memory_space<vmem>>, vector<1x8x8xbf16>
    %140 = vector.shape_cast %139 : vector<1x8x8xbf16> to vector<8x8xbf16>
    %141 = arith.truncf %138 : vector<8x256xf32> to vector<8x256xbf16>
    %cst_72 = arith.constant dense<0.000000e+00> : vector<8x256xf32>
    %142 = tpu.matmul %140, %141, %cst_72 {dimension_numbers = #tpu.dot_dimension_numbers<[1], [0], [0], [1], [0, 0, 1, 1], [], []>} : vector<8x8xbf16>, vector<8x256xbf16>, vector<8x256xf32> -> vector<8x256xf32>
    %143 = arith.addf %135, %142 : vector<8x256xf32>
    %c239_i32_73 = arith.constant 239 : i32
    %144 = tpu.dynamic_rotate %83 by %c239_i32_73 dim 1 : vector<8x256xf32>, i32 -> vector<8x256xf32>
    %145 = vector.broadcast %10 : vector<1x256xf32> to vector<8x256xf32>
    %146 = arith.mulf %144, %145 : vector<8x256xf32>
    %c8_74 = arith.constant 8 : index
    %c0_75 = arith.constant 0 : index
    %c0_76 = arith.constant 0 : index
    %147 = vector.load %arg5[%c8_74, %c0_75, %c0_76] : memref<9x8x8xbf16, #tpu.memory_space<vmem>>, vector<1x8x8xbf16>
    %148 = vector.shape_cast %147 : vector<1x8x8xbf16> to vector<8x8xbf16>
    %149 = arith.truncf %146 : vector<8x256xf32> to vector<8x256xbf16>
    %cst_77 = arith.constant dense<0.000000e+00> : vector<8x256xf32>
    %150 = tpu.matmul %148, %149, %cst_77 {dimension_numbers = #tpu.dot_dimension_numbers<[1], [0], [0], [1], [0, 0, 1, 1], [], []>} : vector<8x8xbf16>, vector<8x256xbf16>, vector<8x256xf32> -> vector<8x256xf32>
    %151 = arith.addf %143, %150 : vector<8x256xf32>
    %c0_78 = arith.constant 0 : index
    %c0_79 = arith.constant 0 : index
    %152 = vector.load %arg6[%c0_78, %c0_79] : memref<8x1xf32, #tpu.memory_space<vmem>>, vector<8x1xf32>
    %153 = vector.broadcast %152 : vector<8x1xf32> to vector<8x256xf32>
    %154 = arith.addf %151, %153 : vector<8x256xf32>
    %cst_80 = arith.constant dense<0.000000e+00> : vector<8xf32>
    %155 = vector.multi_reduction <add>, %154, %cst_80 [1] : vector<8x256xf32> to vector<8xf32>
    %156 = vector.shape_cast %155 : vector<8xf32> to vector<8x1xf32>
    %cst_81 = arith.constant 2.560000e+02 : f32
    %157 = vector.broadcast %cst_81 : f32 to vector<8x1xf32>
    %158 = arith.divf %156, %157 : vector<8x1xf32>
    %cst_82 = arith.constant dense<0xFF800000> : vector<8xf32>
    %159 = vector.multi_reduction <maximumf>, %154, %cst_82 [1] : vector<8x256xf32> to vector<8xf32>
    %160 = vector.shape_cast %159 : vector<8xf32> to vector<8x1xf32>
    %161 = tpu.concatenate %158, %160 in 1 : vector<8x1xf32>, vector<8x1xf32> -> vector<8x2xf32>
    %162 = arith.truncf %161 : vector<8x2xf32> to vector<8x2xbf16>
    %c0_83 = arith.constant 0 : index
    %c0_84 = arith.constant 0 : index
    %163 = vector.load %arg7[%c0_83, %c0_84] : memref<2x8xbf16, #tpu.memory_space<vmem>>, vector<2x8xbf16>
    %cst_85 = arith.constant dense<0.000000e+00> : vector<2x2xf32>
    %164 = tpu.matmul %163, %162, %cst_85 {dimension_numbers = #tpu.dot_dimension_numbers<[1], [0], [0], [1], [0, 0, 1, 1], [], []>} : vector<2x8xbf16>, vector<8x2xbf16>, vector<2x2xf32> -> vector<2x2xf32>
    %cst_86 = arith.constant 0.000000e+00 : f32
    %165 = vector.broadcast %cst_86 : f32 to vector<2x2xf32>
    %166 = arith.maximumf %164, %165 : vector<2x2xf32>
    %167 = arith.truncf %166 : vector<2x2xf32> to vector<2x2xbf16>
    %c0_87 = arith.constant 0 : index
    %c0_88 = arith.constant 0 : index
    %168 = vector.load %arg8[%c0_87, %c0_88] : memref<8x2xbf16, #tpu.memory_space<vmem>>, vector<8x2xbf16>
    %cst_89 = arith.constant dense<0.000000e+00> : vector<8x2xf32>
    %169 = tpu.matmul %168, %167, %cst_89 {dimension_numbers = #tpu.dot_dimension_numbers<[1], [0], [0], [1], [0, 0, 1, 1], [], []>} : vector<8x2xbf16>, vector<2x2xbf16>, vector<8x2xf32> -> vector<8x2xf32>
    %170 = vector.extract_strided_slice %169 {offsets = [0, 0], sizes = [8, 1], strides = [1, 1]} : vector<8x2xf32> to vector<8x1xf32>
    %171 = vector.extract_strided_slice %169 {offsets = [0, 1], sizes = [8, 1], strides = [1, 1]} : vector<8x2xf32> to vector<8x1xf32>
    %172 = arith.addf %170, %171 : vector<8x1xf32>
    %173 = arith.negf %172 : vector<8x1xf32>
    %174 = math.exp %173 : vector<8x1xf32>
    %cst_90 = arith.constant 1.000000e+00 : f32
    %175 = vector.broadcast %cst_90 : f32 to vector<8x1xf32>
    %176 = arith.addf %175, %174 : vector<8x1xf32>
    %177 = arith.divf %175, %176 : vector<8x1xf32>
    %178 = vector.broadcast %177 : vector<8x1xf32> to vector<8x256xf32>
    %179 = arith.mulf %154, %178 : vector<8x256xf32>
    %180 = arith.addf %179, %1 : vector<8x256xf32>
    %cst_91 = arith.constant 0.000000e+00 : f32
    %181 = vector.broadcast %cst_91 : f32 to vector<8x256xf32>
    %182 = arith.maximumf %180, %181 : vector<8x256xf32>
    %c0_92 = arith.constant 0 : index
    %c0_93 = arith.constant 0 : index
    %c0_94 = arith.constant 0 : index
    %183 = vector.load %arg9[%c0_92, %c0_93, %c0_94] : memref<1x8x256xf32, #tpu.memory_space<vmem>>, vector<1x8x256xf32>
    %184 = vector.shape_cast %183 : vector<1x8x256xf32> to vector<8x256xf32>
    %185 = vector.shape_cast %182 : vector<8x256xf32> to vector<1x8x256xf32>
    tpu.vector_store %arg9[%c0_92, %c0_93, %c0_94], %185 {strides = array<i32>} : memref<1x8x256xf32, #tpu.memory_space<vmem>>, vector<1x8x256xf32>,
    return
  }
  func.func @transform_0(%arg0: i32) -> (i32, i32, i32) {
    %c0_i32 = arith.constant 0 : i32
    %c0_i32_0 = arith.constant 0 : i32
    %c0_i32_1 = arith.constant 0 : i32
    return %arg0, %c0_i32, %c0_i32_0 : i32, i32, i32
  }
  func.func @transform_1(%arg0: i32) -> (i32, i32) {
    %c0_i32 = arith.constant 0 : i32
    %c0_i32_0 = arith.constant 0 : i32
    %c0_i32_1 = arith.constant 0 : i32
    return %c0_i32, %c0_i32_0 : i32, i32
  }
  func.func @transform_2(%arg0: i32) -> (i32, i32, i32) {
    %c0_i32 = arith.constant 0 : i32
    %c0_i32_0 = arith.constant 0 : i32
    %c0_i32_1 = arith.constant 0 : i32
    %c0_i32_2 = arith.constant 0 : i32
    return %c0_i32, %c0_i32_0, %c0_i32_1 : i32, i32, i32
  }
  func.func @transform_3(%arg0: i32) -> (i32, i32) {
    %c0_i32 = arith.constant 0 : i32
    %c0_i32_0 = arith.constant 0 : i32
    %c0_i32_1 = arith.constant 0 : i32
    return %c0_i32, %c0_i32_0 : i32, i32
  }
  func.func @transform_4(%arg0: i32) -> (i32, i32, i32) {
    %c0_i32 = arith.constant 0 : i32
    %c0_i32_0 = arith.constant 0 : i32
    %c0_i32_1 = arith.constant 0 : i32
    %c0_i32_2 = arith.constant 0 : i32
    return %c0_i32, %c0_i32_0, %c0_i32_1 : i32, i32, i32
  }
  func.func @transform_5(%arg0: i32) -> (i32, i32) {
    %c0_i32 = arith.constant 0 : i32
    %c0_i32_0 = arith.constant 0 : i32
    %c0_i32_1 = arith.constant 0 : i32
    return %c0_i32, %c0_i32_0 : i32, i32
  }
  func.func @transform_6(%arg0: i32) -> (i32, i32) {
    %c0_i32 = arith.constant 0 : i32
    %c0_i32_0 = arith.constant 0 : i32
    %c0_i32_1 = arith.constant 0 : i32
    return %c0_i32, %c0_i32_0 : i32, i32
  }
  func.func @transform_7(%arg0: i32) -> (i32, i32) {
    %c0_i32 = arith.constant 0 : i32
    %c0_i32_0 = arith.constant 0 : i32
    %c0_i32_1 = arith.constant 0 : i32
    return %c0_i32, %c0_i32_0 : i32, i32
  }
  func.func @transform_8(%arg0: i32) -> (i32, i32, i32) {
    %c0_i32 = arith.constant 0 : i32
    %c0_i32_0 = arith.constant 0 : i32
    %c0_i32_1 = arith.constant 0 : i32
    return %arg0, %c0_i32, %c0_i32_0 : i32, i32, i32
  }
}

</mosaic_0001>

<llo_original>
// kernel: res_block_forward.1
$region0: #{res_block_forward.1}
  #allocation0 [shape = 'u32[]', space=smem, size = 0x4, offset = 0x4, fixed_abs, tag = 'smem constant byte address 0x4 - core index']
  #allocation1 [shape = 'u32[144,128]{1,0:T(1,128)}', space=vmem, size = 0x12000, scoped, tag = 'internal scratch']
  %s0 = inlined_call_operand.vmem [shape: f32[2,8,256], index: 0, kind: input, shape index: {}]
  %s1 = inlined_call_operand.vmem [shape: f32[8,256], index: 1, kind: input, shape index: {}]
  %s2 = inlined_call_operand.vmem [shape: bf16[9,8,8], index: 2, kind: input, shape index: {}]
  %s3 = inlined_call_operand.vmem [shape: f32[8,1], index: 3, kind: input, shape index: {}]
  %s4 = inlined_call_operand.vmem [shape: bf16[9,8,8], index: 4, kind: input, shape index: {}]
  %s5 = inlined_call_operand.vmem [shape: f32[8,1], index: 5, kind: input, shape index: {}]
  %s6 = inlined_call_operand.vmem [shape: bf16[2,8], index: 6, kind: input, shape index: {}]
  %s7 = inlined_call_operand.vmem [shape: bf16[8,2], index: 7, kind: input, shape index: {}]
  %s8 = inlined_call_operand.vmem [shape: f32[2,8,256], index: 8, kind: output, shape index: {}]
  %s9 = sld [smem:[#allocation0]]
  $region65: #{res_block_forward.1} parent=0
    _
  %s11 = ssub.s32 1, %s9
  %s12 = scalar_select 0, %s11, %s9
  loop: start=0, step=1, limit=4
  $region2: #{res_block_forward.1} parent=0 // loop_pre_header
    _
  $region3: #{res_block_forward.1} parent=0 // loop_header
    %s14 = sphi 0, %s18
    %p15 = scmp.ge.s32.totalorder %s14, 4
    %s24 = sphi 0, %s26
    %s27 = sphi 0, %s24
    %s28 = sphi 0, %s27
    %s44 = sphi 0, %s28
    %s48 = sphi 0, %s48
    %s50 = sphi 0, %s48
    %s51 = sphi 0, %s50
    %s65 = sphi 0, %s51
    %s69 = sphi 0, %s69
    %s71 = sphi 0, %s69
    %s72 = sphi 0, %s71
    %s86 = sphi 0, %s72
    %s90 = sphi 0, %s90
    %s92 = sphi 0, %s90
    %s93 = sphi 0, %s92
    %s107 = sphi 0, %s93
    %s111 = sphi 0, %s111
    %s113 = sphi 0, %s111
    %s114 = sphi 0, %s113
    %s128 = sphi 0, %s114
    %s132 = sphi 0, %s132
    %s134 = sphi 0, %s132
    %s135 = sphi 0, %s134
    %s149 = sphi 0, %s135
    %s153 = sphi 0, %s153
    %s155 = sphi 0, %s153
    %s156 = sphi 0, %s155
    %s170 = sphi 0, %s156
    %s174 = sphi 0, %s174
    %s176 = sphi 0, %s174
    %s177 = sphi 0, %s176
    %s191 = sphi 0, %s177
    %s197 = sphi 0, %s199
    %s200 = sphi 0, %s197
    %s201 = sphi 0, %s200
    %s217 = sphi 0, %s201
  $region4: #{res_block_forward.1} parent=0 // loop_header_branch
    %17 = sbr.rel (%p15) target = $region8
  $region5: #{res_block_forward.1} parent=0 // loop_body
    %s19 = ssub.s32 %s14, 1
    %s20 = ssub.s32 %s14, 2
    %s21 = sadd.s32 %s14, 1
    %s22 = ssub.s32 %s14, %s21
    %p23 = scmp.eq.s32.totalorder %s22, 0
    %s25 = sadd.s32 %s24, 1
    %s26 = scalar_select %p23, %s24, %s25
    %p29 = pneg %p23
    %p30 = scmp.eq.s32.totalorder %s14, 1
    %p31 = por %p29, %p30
    %p32 = scmp.ne.s32.totalorder %s24, %s27
    %p33 = scmp.eq.s32.totalorder %s14, 0
    %p34 = por %p32, %p33
    %p35 = scmp.ne.s32.totalorder %s24, %s27
    %p36 = scmp.eq.s32.totalorder %s19, 1
    %p37 = por %p35, %p36
    %p38 = scmp.ne.s32.totalorder %s27, %s28
    %p39 = scmp.eq.s32.totalorder %s19, 0
    %p40 = por %p38, %p39
    %p41 = scmp.ne.s32.totalorder %s27, %s28
    %p42 = scmp.eq.s32.totalorder %s20, 1
    %p43 = por %p41, %p42
    %p45 = scmp.ne.s32.totalorder %s28, %s44
    %p46 = scmp.eq.s32.totalorder %s20, 0
    %p47 = por %p45, %p46
    %s49 = sadd.s32 %s48, 1
    %p52 = scmp.eq.s32.totalorder %s14, 1
    %p53 = scmp.ne.s32.totalorder %s48, %s50
    %p54 = scmp.eq.s32.totalorder %s14, 0
    %p55 = por %p53, %p54
    %p56 = scmp.ne.s32.totalorder %s48, %s50
    %p57 = scmp.eq.s32.totalorder %s19, 1
    %p58 = por %p56, %p57
    %p59 = scmp.ne.s32.totalorder %s50, %s51
    %p60 = scmp.eq.s32.totalorder %s19, 0
    %p61 = por %p59, %p60
    %p62 = scmp.ne.s32.totalorder %s50, %s51
    %p63 = scmp.eq.s32.totalorder %s20, 1
    %p64 = por %p62, %p63
    %p66 = scmp.ne.s32.totalorder %s51, %s65
    %p67 = scmp.eq.s32.totalorder %s20, 0
    %p68 = por %p66, %p67
    %s70 = sadd.s32 %s69, 1
    %p73 = scmp.eq.s32.totalorder %s14, 1
    %p74 = scmp.ne.s32.totalorder %s69, %s71
    %p75 = scmp.eq.s32.totalorder %s14, 0
    %p76 = por %p74, %p75
    %p77 = scmp.ne.s32.totalorder %s69, %s71
    %p78 = scmp.eq.s32.totalorder %s19, 1
    %p79 = por %p77, %p78
    %p80 = scmp.ne.s32.totalorder %s71, %s72
    %p81 = scmp.eq.s32.totalorder %s19, 0
    %p82 = por %p80, %p81
    %p83 = scmp.ne.s32.totalorder %s71, %s72
    %p84 = scmp.eq.s32.totalorder %s20, 1
    %p85 = por %p83, %p84
    %p87 = scmp.ne.s32.totalorder %s72, %s86
    %p88 = scmp.eq.s32.totalorder %s20, 0
    %p89 = por %p87, %p88
    %s91 = sadd.s32 %s90, 1
    %p94 = scmp.eq.s32.totalorder %s14, 1
    %p95 = scmp.ne.s32.totalorder %s90, %s92
    %p96 = scmp.eq.s32.totalorder %s14, 0
    %p97 = por %p95, %p96
    %p98 = scmp.ne.s32.totalorder %s90, %s92
    %p99 = scmp.eq.s32.totalorder %s19, 1
    %p100 = por %p98, %p99
    %p101 = scmp.ne.s32.totalorder %s92, %s93
    %p102 = scmp.eq.s32.totalorder %s19, 0
    %p103 = por %p101, %p102
    %p104 = scmp.ne.s32.totalorder %s92, %s93
    %p105 = scmp.eq.s32.totalorder %s20, 1
    %p106 = por %p104, %p105
    %p108 = scmp.ne.s32.totalorder %s93, %s107
    %p109 = scmp.eq.s32.totalorder %s20, 0
    %p110 = por %p108, %p109
    %s112 = sadd.s32 %s111, 1
    %p115 = scmp.eq.s32.totalorder %s14, 1
    %p116 = scmp.ne.s32.totalorder %s111, %s113
    %p117 = scmp.eq.s32.totalorder %s14, 0
    %p118 = por %p116, %p117
    %p119 = scmp.ne.s32.totalorder %s111, %s113
    %p120 = scmp.eq.s32.totalorder %s19, 1
    %p121 = por %p119, %p120
    %p122 = scmp.ne.s32.totalorder %s113, %s114
    %p123 = scmp.eq.s32.totalorder %s19, 0
    %p124 = por %p122, %p123
    %p125 = scmp.ne.s32.totalorder %s113, %s114
    %p126 = scmp.eq.s32.totalorder %s20, 1
    %p127 = por %p125, %p126
    %p129 = scmp.ne.s32.totalorder %s114, %s128
    %p130 = scmp.eq.s32.totalorder %s20, 0
    %p131 = por %p129, %p130
    %s133 = sadd.s32 %s132, 1
    %p136 = scmp.eq.s32.totalorder %s14, 1
    %p137 = scmp.ne.s32.totalorder %s132, %s134
    %p138 = scmp.eq.s32.totalorder %s14, 0
    %p139 = por %p137, %p138
    %p140 = scmp.ne.s32.totalorder %s132, %s134
    %p141 = scmp.eq.s32.totalorder %s19, 1
    %p142 = por %p140, %p141
    %p143 = scmp.ne.s32.totalorder %s134, %s135
    %p144 = scmp.eq.s32.totalorder %s19, 0
    %p145 = por %p143, %p144
    %p146 = scmp.ne.s32.totalorder %s134, %s135
    %p147 = scmp.eq.s32.totalorder %s20, 1
    %p148 = por %p146, %p147
    %p150 = scmp.ne.s32.totalorder %s135, %s149
    %p151 = scmp.eq.s32.totalorder %s20, 0
    %p152 = por %p150, %p151
    %s154 = sadd.s32 %s153, 1
    %p157 = scmp.eq.s32.totalorder %s14, 1
    %p158 = scmp.ne.s32.totalorder %s153, %s155
    %p159 = scmp.eq.s32.totalorder %s14, 0
    %p160 = por %p158, %p159
    %p161 = scmp.ne.s32.totalorder %s153, %s155
    %p162 = scmp.eq.s32.totalorder %s19, 1
    %p163 = por %p161, %p162
    %p164 = scmp.ne.s32.totalorder %s155, %s156
    %p165 = scmp.eq.s32.totalorder %s19, 0
    %p166 = por %p164, %p165
    %p167 = scmp.ne.s32.totalorder %s155, %s156
    %p168 = scmp.eq.s32.totalorder %s20, 1
    %p169 = por %p167, %p168
    %p171 = scmp.ne.s32.totalorder %s156, %s170
    %p172 = scmp.eq.s32.totalorder %s20, 0
    %p173 = por %p171, %p172
    %s175 = sadd.s32 %s174, 1
    %p178 = scmp.eq.s32.totalorder %s14, 1
    %p179 = scmp.ne.s32.totalorder %s174, %s176
    %p180 = scmp.eq.s32.totalorder %s14, 0
    %p181 = por %p179, %p180
    %p182 = scmp.ne.s32.totalorder %s174, %s176
    %p183 = scmp.eq.s32.totalorder %s19, 1
    %p184 = por %p182, %p183
    %p185 = scmp.ne.s32.totalorder %s176, %s177
    %p186 = scmp.eq.s32.totalorder %s19, 0
    %p187 = por %p185, %p186
    %p188 = scmp.ne.s32.totalorder %s176, %s177
    %p189 = scmp.eq.s32.totalorder %s20, 1
    %p190 = por %p188, %p189
    %p192 = scmp.ne.s32.totalorder %s177, %s191
    %p193 = scmp.eq.s32.totalorder %s20, 0
    %p194 = por %p192, %p193
    %s195 = ssub.s32 %s14, %s21
    %p196 = scmp.eq.s32.totalorder %s195, 0
    %s198 = sadd.s32 %s197, 1
    %s199 = scalar_select %p196, %s197, %s198
    %p202 = pneg %p196
    %p203 = scmp.eq.s32.totalorder %s14, 1
    %p204 = por %p202, %p203
    %p205 = scmp.ne.s32.totalorder %s197, %s200
    %p206 = scmp.eq.s32.totalorder %s14, 0
    %p207 = por %p205, %p206
    %p208 = scmp.ne.s32.totalorder %s197, %s200
    %p209 = scmp.eq.s32.totalorder %s19, 1
    %p210 = por %p208, %p209
    %p211 = scmp.ne.s32.totalorder %s200, %s201
    %p212 = scmp.eq.s32.totalorder %s19, 0
    %p213 = por %p211, %p212
    %p214 = scmp.ne.s32.totalorder %s200, %s201
    %p215 = scmp.eq.s32.totalorder %s20, 1
    %p216 = por %p214, %p215
    %p218 = scmp.ne.s32.totalorder %s201, %s217
    %p219 = scmp.eq.s32.totalorder %s20, 0
    %p220 = por %p218, %p219
    %p221 = scmp.le.s32.totalorder 1, %s14
    %p222 = scmp.lt.s32.totalorder %s14, 3
    %p223 = pnand %p221, %p222
    %p224 = pneg %p223
    // Predicated region
    $region9: #{res_block_forward.1} parent=5 // pred_check
      _
    $region10: #{res_block_forward.1} parent=5 // pred_check_branch
      %226 = sbr.rel (%p223) target = $region12
    $region11: #{res_block_forward.1} parent=5 // pred_region
      %s227 = ssub.s32 %s14, 1
      // Predicated region
      $region13: #{res_block_forward.1} parent=11 // pred_check
        %p228 = pneg %p61
      $region14: #{res_block_forward.1} parent=11 // pred_check_branch
        %230 = sbr.rel (%p228) target = $region16
      $region15: #{res_block_forward.1} parent=11 // pred_region
        _
      $region16: #{res_block_forward.1} parent=11 // pred_fallthru
        _
      // Predicated region
      $region17: #{res_block_forward.1} parent=11 // pred_check
        %p231 = pneg %p82
      $region18: #{res_block_forward.1} parent=11 // pred_check_branch
        %233 = sbr.rel (%p231) target = $region20
      $region19: #{res_block_forward.1} parent=11 // pred_region
        _
      $region20: #{res_block_forward.1} parent=11 // pred_fallthru
        _
      // Predicated region
      $region21: #{res_block_forward.1} parent=11 // pred_check
        %p234 = pneg %p103
      $region22: #{res_block_forward.1} parent=11 // pred_check_branch
        %236 = sbr.rel (%p234) target = $region24
      $region23: #{res_block_forward.1} parent=11 // pred_region
        _
      $region24: #{res_block_forward.1} parent=11 // pred_fallthru
        _
      // Predicated region
      $region25: #{res_block_forward.1} parent=11 // pred_check
        %p237 = pneg %p124
      $region26: #{res_block_forward.1} parent=11 // pred_check_branch
        %239 = sbr.rel (%p237) target = $region28
      $region27: #{res_block_forward.1} parent=11 // pred_region
        _
      $region28: #{res_block_forward.1} parent=11 // pred_fallthru
        _
      // Predicated region
      $region29: #{res_block_forward.1} parent=11 // pred_check
        %p240 = pneg %p145
      $region30: #{res_block_forward.1} parent=11 // pred_check_branch
        %242 = sbr.rel (%p240) target = $region32
      $region31: #{res_block_forward.1} parent=11 // pred_region
        _
      $region32: #{res_block_forward.1} parent=11 // pred_fallthru
        _
      // Predicated region
      $region33: #{res_block_forward.1} parent=11 // pred_check
        %p243 = pneg %p166
      $region34: #{res_block_forward.1} parent=11 // pred_check_branch
        %245 = sbr.rel (%p243) target = $region36
      $region35: #{res_block_forward.1} parent=11 // pred_region
        _
      $region36: #{res_block_forward.1} parent=11 // pred_fallthru
        _
      // Predicated region
      $region37: #{res_block_forward.1} parent=11 // pred_check
        %p246 = pneg %p187
      $region38: #{res_block_forward.1} parent=11 // pred_check_branch
        %248 = sbr.rel (%p246) target = $region40
      $region39: #{res_block_forward.1} parent=11 // pred_region
        _
      $region40: #{res_block_forward.1} parent=11 // pred_fallthru
        _
    $region12: #{res_block_forward.1} parent=5 // pred_fallthru
      _
    %p249 = scmp.lt.s32.totalorder %s14, 2
    // Predicated region
    $region41: #{res_block_forward.1} parent=5 // pred_check
      %p250 = pneg %p249
    $region42: #{res_block_forward.1} parent=5 // pred_check_branch
      %252 = sbr.rel (%p250) target = $region44
    $region43: #{res_block_forward.1} parent=5 // pred_region
      // Predicated region
      $region45: #{res_block_forward.1} parent=43 // pred_check
        %p253 = pneg %p34
      $region46: #{res_block_forward.1} parent=43 // pred_check_branch
        %255 = sbr.rel (%p253) target = $region48
      $region47: #{res_block_forward.1} parent=43 // pred_region
        %p256 = scmp.lt.s32.totalorder %s14, 1
        %s257 = scalar_select %p256, %s14, 1
        %s258 = smul.addr %s257, 2
        %s259 = smul.addr %s258, 8
        %s260 = scalar_lea.vmem %s0, %s259
      $region48: #{res_block_forward.1} parent=43 // pred_fallthru
        _
    $region44: #{res_block_forward.1} parent=5 // pred_fallthru
      _
    %p261 = scmp.le.s32.totalorder 1, %s14
    %p262 = scmp.lt.s32.totalorder %s14, 3
    %p263 = pnand %p261, %p262
    %p264 = pneg %p263
    // Predicated region
    $region49: #{res_block_forward.1} parent=5 // pred_check
      _
    $region50: #{res_block_forward.1} parent=5 // pred_check_branch
      %266 = sbr.rel (%p263) target = $region52
    $region51: #{res_block_forward.1} parent=5 // pred_region
      %s267 = ssub.s32 %s14, 1
      %p268 = scmp.lt.s32.totalorder %s19, 1
      %s269 = scalar_select %p268, %s19, 1
      %s270 = smul.addr %s269, 2
      %s271 = smul.addr %s270, 8
      %s272 = scalar_lea.vmem %s0, %s271
      %p273 = pneg %p40
      %p274 = pneg %p37
      %p275 = pneg %p61
      %p276 = pneg %p58
      %p277 = pneg %p82
      %p278 = pneg %p79
      %p279 = pneg %p103
      %p280 = pneg %p100
      %p281 = pneg %p124
      %p282 = pneg %p121
      %p283 = pneg %p145
      %p284 = pneg %p142
      %p285 = pneg %p166
      %p286 = pneg %p163
      %p287 = pneg %p187
      %p288 = pneg %p184
      %p289 = pneg %p213
      %p290 = pneg %p210
      %p291 = scmp.lt.s32.totalorder %s19, 1
      %s292 = scalar_select %p291, %s19, 1
      %s293 = smul.addr %s292, 2
      %s294 = smul.addr %s293, 8
      %s295 = scalar_lea.vmem %s8, %s294
      %p296 = scmp.lt.s32.totalorder %s19, 1
      %s297 = scalar_select %p296, %s19, 1
      %s298 = smul.addr %s297, 2
      %s299 = smul.addr %s298, 8
      %s300 = scalar_lea.vmem %s0, %s299
      %p301 = scmp.lt.s32.totalorder %s19, 1
      %s302 = scalar_select %p301, %s19, 1
      %s303 = smul.addr %s302, 2
      %s304 = smul.addr %s303, 8
      %s305 = scalar_lea.vmem %s8, %s304
      %v307 = vld [vmem:[%s300] sm:$0xff]
      %v308 = vld [vmem:[%s300 + $0x8] sm:$0xff]
      %v309 = vld [vmem:[%s1] sm:$0xff]
      %v310 = vld [vmem:[%s1 + $0x8] sm:$0xff]
      %311 = vrot.lane.b32.xlu0 %v307, 17
      %v312 = vpop.permute.xlu0 %311
      %313 = vrot.lane.b32.xlu0 %v308, 17
      %v314 = vpop.permute.xlu0 %313
      %v315 = vlaneseq
      %v316 = vand.u32 %v315, 127
      %vm317 = vcmp.lt.s32.totalorder %v316, 17
      %v318 = vsel %vm317, %v312, %v314
      %v319 = vsel %vm317, %v314, %v312
      %v320 = vlaneseq
      %v321 = vshrl.u32 %v320, 7
      %v322 = vsub.s32 0, %v321
      %v323 = vrot.slane %v309, %v322
      %v324 = vlaneseq
      %v325 = vshrl.u32 %v324, 7
      %v326 = vsub.s32 0, %v325
      %v327 = vrot.slane %v310, %v326
      %v328 = vmul.f32 %v319, %v323
      %v329 = vmul.f32 %v318, %v327
      %v330 = vld [vmem:[%s2] sm:$0xf]
      %v331 = vpack.c.bf16 %v328, %v328
      %v332 = vpack.c.bf16 %v329, %v329
      %333 = vrot.lane.b32.xlu0 %v307, 16
      %v334 = vpop.permute.xlu0 %333
      %335 = vrot.lane.b32.xlu0 %v308, 16
      %v336 = vpop.permute.xlu0 %335
      %vm337 = vcmp.lt.s32.totalorder %v316, 16
      %v338 = vsel %vm337, %v334, %v336
      %v339 = vsel %vm337, %v336, %v334
      %v340 = vlaneseq
      %v341 = vshrl.u32 %v340, 7
      %v342 = vsub.s32 1, %v341
      %v343 = vrot.slane %v309, %v342
      %v344 = vlaneseq
      %v345 = vshrl.u32 %v344, 7
      %v346 = vsub.s32 1, %v345
      %v347 = vrot.slane %v310, %v346
      %v348 = vmul.f32 %v339, %v343
      %v349 = vmul.f32 %v338, %v347
      %s350 = scalar_lea.vmem %s2, 4
      %v351 = vld [vmem:[%s350] sm:$0xf]
      %v352 = vpack.c.bf16 %v348, %v348
      %v353 = vpack.c.bf16 %v349, %v349
      %vm354 = vcmask 64512
      %v356 = vsel %vm354, %v351, 0
      %vm358 = vcmask 1043456
      %v360 = vsel %vm358, %v352, 0
      %v363 = vsel %vm358, %v353, 0
      %365 = vmatprep.subr.bf16.mxu0 0
      %366 = vmatpush1.bf16.msra.mxu0 0
      %367 = vmatprep.subr.bf16.mxu0 0
      %368 = vmatpush1.bf16.msra.mxu0 0
      %369 = vmatprep.subr.bf16.mxu0 0
      %370 = vmatpush1.bf16.msra.mxu0 0
      %371 = vmatprep.subr.bf16.mxu0 0
      %372 = vmatpush1.bf16.msra.mxu0 0
      %373 = vmatprep.subr.bf16.mxu0 0
      %374 = vmatpush1.bf16.msra.mxu0 0
      %375 = vmatprep.subr.bf16.mxu0 0
      %376 = vmatpush1.bf16.msra.mxu0 0
      %377 = vmatprep.subr.bf16.mxu0 0
      %378 = vmatpush1.bf16.msra.mxu0 0
      %379 = vmatprep.subr.bf16.mxu0 %v363
      %380 = vmatpush1.bf16.msra.mxu0 %v360
      %381 = vmatprep.subr.bf16.mxu0 0
      %382 = vmatpush2.bf16.msra.mxu0 0
      %383 = vmatprep.subr.bf16.mxu0 0
      %384 = vmatpush2.bf16.msra.mxu0 0
      %385 = vmatprep.subr.bf16.mxu0 0
      %386 = vmatpush2.bf16.msra.mxu0 0
      %387 = vmatprep.subr.bf16.mxu0 0
      %388 = vmatpush2.bf16.msra.mxu0 0
      %389 = vmatprep.subr.bf16.mxu0 0
      %390 = vmatpush2.bf16.msra.mxu0 0
      %391 = vmatprep.subr.bf16.mxu0 0
      %392 = vmatpush2.bf16.msra.mxu0 0
      %393 = vmatprep.subr.bf16.mxu0 0
      %394 = vmatpush2.bf16.msra.mxu0 0
      %395 = vmatprep.subr.bf16.mxu0 0
      %396 = vmatpush2.bf16.msra.mxu0 0
      %397 = vmatprep.mubr.bf16.mxu0 0
      %398 = vmatmul.mubr.bf16.gmra.mxu0 %v356
      %v399 = vpop.f32.mrf.mxu0
      %v400 = vadd.f32 0.0, %v399
      %v401 = vpop.f32.mrf.mxu0
      %v402 = vadd.f32 0.0, %v401
      %v403 = vpop.f32.mrf.mxu0
      %v404 = vpop.f32.mrf.mxu0
      %405 = vdwg.mxu0
      %v407 = vsel %vm354, %v330, 0
      %v410 = vsel %vm358, %v331, 0
      %v413 = vsel %vm358, %v332, 0
      %415 = vmatprep.subr.bf16.mxu0 0
      %416 = vmatpush1.bf16.msra.mxu0 0
      %417 = vmatprep.subr.bf16.mxu0 0
      %418 = vmatpush1.bf16.msra.mxu0 0
      %419 = vmatprep.subr.bf16.mxu0 0
      %420 = vmatpush1.bf16.msra.mxu0 0
      %421 = vmatprep.subr.bf16.mxu0 0
      %422 = vmatpush1.bf16.msra.mxu0 0
      %423 = vmatprep.subr.bf16.mxu0 0
      %424 = vmatpush1.bf16.msra.mxu0 0
      %425 = vmatprep.subr.bf16.mxu0 0
      %426 = vmatpush1.bf16.msra.mxu0 0
      %427 = vmatprep.subr.bf16.mxu0 0
      %428 = vmatpush1.bf16.msra.mxu0 0
      %429 = vmatprep.subr.bf16.mxu0 %v413
      %430 = vmatpush1.bf16.msra.mxu0 %v410
      %431 = vmatprep.subr.bf16.mxu0 0
      %432 = vmatpush2.bf16.msra.mxu0 0
      %433 = vmatprep.subr.bf16.mxu0 0
      %434 = vmatpush2.bf16.msra.mxu0 0
      %435 = vmatprep.subr.bf16.mxu0 0
      %436 = vmatpush2.bf16.msra.mxu0 0
      %437 = vmatprep.subr.bf16.mxu0 0
      %438 = vmatpush2.bf16.msra.mxu0 0
      %439 = vmatprep.subr.bf16.mxu0 0
      %440 = vmatpush2.bf16.msra.mxu0 0
      %441 = vmatprep.subr.bf16.mxu0 0
      %442 = vmatpush2.bf16.msra.mxu0 0
      %443 = vmatprep.subr.bf16.mxu0 0
      %444 = vmatpush2.bf16.msra.mxu0 0
      %445 = vmatprep.subr.bf16.mxu0 0
      %446 = vmatpush2.bf16.msra.mxu0 0
      %447 = vmatprep.mubr.bf16.mxu0 0
      %448 = vmatmul.mubr.bf16.gmra.mxu0 %v407
      %v449 = vpop.f32.mrf.mxu0
      %v450 = vadd.f32 %v400, %v449
      %v451 = vpop.f32.mrf.mxu0
      %v452 = vadd.f32 %v402, %v451
      %v453 = vpop.f32.mrf.mxu0
      %v454 = vpop.f32.mrf.mxu0
      %455 = vdwg.mxu0
      %456 = vrot.lane.b32.xlu0 %v307, 15
      %v457 = vpop.permute.xlu0 %456
      %458 = vrot.lane.b32.xlu0 %v308, 15
      %v459 = vpop.permute.xlu0 %458
      %vm460 = vcmp.lt.s32.totalorder %v316, 15
      %v461 = vsel %vm460, %v457, %v459
      %v462 = vsel %vm460, %v459, %v457
      %v463 = vlaneseq
      %v464 = vshrl.u32 %v463, 7
      %v465 = vsub.s32 2, %v464
      %v466 = vrot.slane %v309, %v465
      %v467 = vlaneseq
      %v468 = vshrl.u32 %v467, 7
      %v469 = vsub.s32 2, %v468
      %v470 = vrot.slane %v310, %v469
      %v471 = vmul.f32 %v462, %v466
      %v472 = vmul.f32 %v461, %v470
      %s473 = scalar_lea.vmem %s2, 8
      %v474 = vld [vmem:[%s473] sm:$0xf]
      %v475 = vpack.c.bf16 %v471, %v471
      %v476 = vpack.c.bf16 %v472, %v472
      %v478 = vsel %vm354, %v474, 0
      %v481 = vsel %vm358, %v475, 0
      %v484 = vsel %vm358, %v476, 0
      %486 = vmatprep.subr.bf16.mxu0 0
      %487 = vmatpush1.bf16.msra.mxu0 0
      %488 = vmatprep.subr.bf16.mxu0 0
      %489 = vmatpush1.bf16.msra.mxu0 0
      %490 = vmatprep.subr.bf16.mxu0 0
      %491 = vmatpush1.bf16.msra.mxu0 0
      %492 = vmatprep.subr.bf16.mxu0 0
      %493 = vmatpush1.bf16.msra.mxu0 0
      %494 = vmatprep.subr.bf16.mxu0 0
      %495 = vmatpush1.bf16.msra.mxu0 0
      %496 = vmatprep.subr.bf16.mxu0 0
      %497 = vmatpush1.bf16.msra.mxu0 0
      %498 = vmatprep.subr.bf16.mxu0 0
      %499 = vmatpush1.bf16.msra.mxu0 0
      %500 = vmatprep.subr.bf16.mxu0 %v484
      %501 = vmatpush1.bf16.msra.mxu0 %v481
      %502 = vmatprep.subr.bf16.mxu0 0
      %503 = vmatpush2.bf16.msra.mxu0 0
      %504 = vmatprep.subr.bf16.mxu0 0
      %505 = vmatpush2.bf16.msra.mxu0 0
      %506 = vmatprep.subr.bf16.mxu0 0
      %507 = vmatpush2.bf16.msra.mxu0 0
      %508 = vmatprep.subr.bf16.mxu0 0
      %509 = vmatpush2.bf16.msra.mxu0 0
      %510 = vmatprep.subr.bf16.mxu0 0
      %511 = vmatpush2.bf16.msra.mxu0 0
      %512 = vmatprep.subr.bf16.mxu0 0
      %513 = vmatpush2.bf16.msra.mxu0 0
      %514 = vmatprep.subr.bf16.mxu0 0
      %515 = vmatpush2.bf16.msra.mxu0 0
      %516 = vmatprep.subr.bf16.mxu0 0
      %517 = vmatpush2.bf16.msra.mxu0 0
      %518 = vmatprep.mubr.bf16.mxu0 0
      %519 = vmatmul.mubr.bf16.gmra.mxu0 %v478
      %v520 = vpop.f32.mrf.mxu0
      %v521 = vadd.f32 0.0, %v520
      %v522 = vpop.f32.mrf.mxu0
      %v523 = vadd.f32 0.0, %v522
      %v524 = vpop.f32.mrf.mxu0
      %v525 = vpop.f32.mrf.mxu0
      %526 = vdwg.mxu0
      %v527 = vadd.f32 %v450, %v521
      %v528 = vadd.f32 %v452, %v523
      %529 = vrot.lane.b32.xlu0 %v307, 1
      %v530 = vpop.permute.xlu0 %529
      %531 = vrot.lane.b32.xlu0 %v308, 1
      %v532 = vpop.permute.xlu0 %531
      %vm533 = vcmp.lt.s32.totalorder %v316, 1
      %v534 = vsel %vm533, %v530, %v532
      %v535 = vsel %vm533, %v532, %v530
      %v536 = vlaneseq
      %v537 = vshrl.u32 %v536, 7
      %v538 = vsub.s32 3, %v537
      %v539 = vrot.slane %v309, %v538
      %v540 = vlaneseq
      %v541 = vshrl.u32 %v540, 7
      %v542 = vsub.s32 3, %v541
      %v543 = vrot.slane %v310, %v542
      %v544 = vmul.f32 %v535, %v539
      %v545 = vmul.f32 %v534, %v543
      %s546 = scalar_lea.vmem %s2, 12
      %v547 = vld [vmem:[%s546] sm:$0xf]
      %v548 = vpack.c.bf16 %v544, %v544
      %v549 = vpack.c.bf16 %v545, %v545
      %v551 = vsel %vm354, %v547, 0
      %v554 = vsel %vm358, %v548, 0
      %v557 = vsel %vm358, %v549, 0
      %559 = vmatprep.subr.bf16.mxu0 0
      %560 = vmatpush1.bf16.msra.mxu0 0
      %561 = vmatprep.subr.bf16.mxu0 0
      %562 = vmatpush1.bf16.msra.mxu0 0
      %563 = vmatprep.subr.bf16.mxu0 0
      %564 = vmatpush1.bf16.msra.mxu0 0
      %565 = vmatprep.subr.bf16.mxu0 0
      %566 = vmatpush1.bf16.msra.mxu0 0
      %567 = vmatprep.subr.bf16.mxu0 0
      %568 = vmatpush1.bf16.msra.mxu0 0
      %569 = vmatprep.subr.bf16.mxu0 0
      %570 = vmatpush1.bf16.msra.mxu0 0
      %571 = vmatprep.subr.bf16.mxu0 0
      %572 = vmatpush1.bf16.msra.mxu0 0
      %573 = vmatprep.subr.bf16.mxu0 %v557
      %574 = vmatpush1.bf16.msra.mxu0 %v554
      %575 = vmatprep.subr.bf16.mxu0 0
      %576 = vmatpush2.bf16.msra.mxu0 0
      %577 = vmatprep.subr.bf16.mxu0 0
      %578 = vmatpush2.bf16.msra.mxu0 0
      %579 = vmatprep.subr.bf16.mxu0 0
      %580 = vmatpush2.bf16.msra.mxu0 0
      %581 = vmatprep.subr.bf16.mxu0 0
      %582 = vmatpush2.bf16.msra.mxu0 0
      %583 = vmatprep.subr.bf16.mxu0 0
      %584 = vmatpush2.bf16.msra.mxu0 0
      %585 = vmatprep.subr.bf16.mxu0 0
      %586 = vmatpush2.bf16.msra.mxu0 0
      %587 = vmatprep.subr.bf16.mxu0 0
      %588 = vmatpush2.bf16.msra.mxu0 0
      %589 = vmatprep.subr.bf16.mxu0 0
      %590 = vmatpush2.bf16.msra.mxu0 0
      %591 = vmatprep.mubr.bf16.mxu0 0
      %592 = vmatmul.mubr.bf16.gmra.mxu0 %v551
      %v593 = vpop.f32.mrf.mxu0
      %v594 = vadd.f32 0.0, %v593
      %v595 = vpop.f32.mrf.mxu0
      %v596 = vadd.f32 0.0, %v595
      %v597 = vpop.f32.mrf.mxu0
      %v598 = vpop.f32.mrf.mxu0
      %599 = vdwg.mxu0
      %v600 = vadd.f32 %v527, %v594
      %v601 = vadd.f32 %v528, %v596
      %s602 = scalar_lea.vmem %s2, 16
      %v603 = vld [vmem:[%s602] sm:$0xf]
      %v604 = vpack.c.bf16 %v307, %v307
      %v605 = vpack.c.bf16 %v308, %v308
      %v607 = vsel %vm354, %v603, 0
      %v610 = vsel %vm358, %v604, 0
      %v613 = vsel %vm358, %v605, 0
      %615 = vmatprep.subr.bf16.mxu0 0
      %616 = vmatpush1.bf16.msra.mxu0 0
      %617 = vmatprep.subr.bf16.mxu0 0
      %618 = vmatpush1.bf16.msra.mxu0 0
      %619 = vmatprep.subr.bf16.mxu0 0
      %620 = vmatpush1.bf16.msra.mxu0 0
      %621 = vmatprep.subr.bf16.mxu0 0
      %622 = vmatpush1.bf16.msra.mxu0 0
      %623 = vmatprep.subr.bf16.mxu0 0
      %624 = vmatpush1.bf16.msra.mxu0 0
      %625 = vmatprep.subr.bf16.mxu0 0
      %626 = vmatpush1.bf16.msra.mxu0 0
      %627 = vmatprep.subr.bf16.mxu0 0
      %628 = vmatpush1.bf16.msra.mxu0 0
      %629 = vmatprep.subr.bf16.mxu0 %v613
      %630 = vmatpush1.bf16.msra.mxu0 %v610
      %631 = vmatprep.subr.bf16.mxu0 0
      %632 = vmatpush2.bf16.msra.mxu0 0
      %633 = vmatprep.subr.bf16.mxu0 0
      %634 = vmatpush2.bf16.msra.mxu0 0
      %635 = vmatprep.subr.bf16.mxu0 0
      %636 = vmatpush2.bf16.msra.mxu0 0
      %637 = vmatprep.subr.bf16.mxu0 0
      %638 = vmatpush2.bf16.msra.mxu0 0
      %639 = vmatprep.subr.bf16.mxu0 0
      %640 = vmatpush2.bf16.msra.mxu0 0
      %641 = vmatprep.subr.bf16.mxu0 0
      %642 = vmatpush2.bf16.msra.mxu0 0
      %643 = vmatprep.subr.bf16.mxu0 0
      %644 = vmatpush2.bf16.msra.mxu0 0
      %645 = vmatprep.subr.bf16.mxu0 0
      %646 = vmatpush2.bf16.msra.mxu0 0
      %647 = vmatprep.mubr.bf16.mxu0 0
      %648 = vmatmul.mubr.bf16.gmra.mxu0 %v607
      %v649 = vpop.f32.mrf.mxu0
      %v650 = vadd.f32 0.0, %v649
      %v651 = vpop.f32.mrf.mxu0
      %v652 = vadd.f32 0.0, %v651
      %v653 = vpop.f32.mrf.mxu0
      %v654 = vpop.f32.mrf.mxu0
      %655 = vdwg.mxu0
      %v656 = vadd.f32 %v600, %v650
      %v657 = vadd.f32 %v601, %v652
      %658 = vrot.lane.b32.xlu0 %v307, 127
      %v659 = vpop.permute.xlu0 %658
      %660 = vrot.lane.b32.xlu0 %v308, 127
      %v661 = vpop.permute.xlu0 %660
      %vm662 = vcmp.lt.s32.totalorder %v316, 127
      %v663 = vsel %vm662, %v659, %v661
      %v664 = vsel %vm662, %v661, %v659
      %v665 = vlaneseq
      %v666 = vshrl.u32 %v665, 7
      %v667 = vsub.s32 4, %v666
      %v668 = vrot.slane %v309, %v667
      %v669 = vlaneseq
      %v670 = vshrl.u32 %v669, 7
      %v671 = vsub.s32 4, %v670
      %v672 = vrot.slane %v310, %v671
      %v673 = vmul.f32 %v663, %v668
      %v674 = vmul.f32 %v664, %v672
      %s675 = scalar_lea.vmem %s2, 20
      %v676 = vld [vmem:[%s675] sm:$0xf]
      %v677 = vpack.c.bf16 %v673, %v673
      %v678 = vpack.c.bf16 %v674, %v674
      %v680 = vsel %vm354, %v676, 0
      %v683 = vsel %vm358, %v677, 0
      %v686 = vsel %vm358, %v678, 0
      %688 = vmatprep.subr.bf16.mxu0 0
      %689 = vmatpush1.bf16.msra.mxu0 0
      %690 = vmatprep.subr.bf16.mxu0 0
      %691 = vmatpush1.bf16.msra.mxu0 0
      %692 = vmatprep.subr.bf16.mxu0 0
      %693 = vmatpush1.bf16.msra.mxu0 0
      %694 = vmatprep.subr.bf16.mxu0 0
      %695 = vmatpush1.bf16.msra.mxu0 0
      %696 = vmatprep.subr.bf16.mxu0 0
      %697 = vmatpush1.bf16.msra.mxu0 0
      %698 = vmatprep.subr.bf16.mxu0 0
      %699 = vmatpush1.bf16.msra.mxu0 0
      %700 = vmatprep.subr.bf16.mxu0 0
      %701 = vmatpush1.bf16.msra.mxu0 0
      %702 = vmatprep.subr.bf16.mxu0 %v686
      %703 = vmatpush1.bf16.msra.mxu0 %v683
      %704 = vmatprep.subr.bf16.mxu0 0
      %705 = vmatpush2.bf16.msra.mxu0 0
      %706 = vmatprep.subr.bf16.mxu0 0
      %707 = vmatpush2.bf16.msra.mxu0 0
      %708 = vmatprep.subr.bf16.mxu0 0
      %709 = vmatpush2.bf16.msra.mxu0 0
      %710 = vmatprep.subr.bf16.mxu0 0
      %711 = vmatpush2.bf16.msra.mxu0 0
      %712 = vmatprep.subr.bf16.mxu0 0
      %713 = vmatpush2.bf16.msra.mxu0 0
      %714 = vmatprep.subr.bf16.mxu0 0
      %715 = vmatpush2.bf16.msra.mxu0 0
      %716 = vmatprep.subr.bf16.mxu0 0
      %717 = vmatpush2.bf16.msra.mxu0 0
      %718 = vmatprep.subr.bf16.mxu0 0
      %719 = vmatpush2.bf16.msra.mxu0 0
      %720 = vmatprep.mubr.bf16.mxu0 0
      %721 = vmatmul.mubr.bf16.gmra.mxu0 %v680
      %v722 = vpop.f32.mrf.mxu0
      %v723 = vadd.f32 0.0, %v722
      %v724 = vpop.f32.mrf.mxu0
      %v725 = vadd.f32 0.0, %v724
      %v726 = vpop.f32.mrf.mxu0
      %v727 = vpop.f32.mrf.mxu0
      %728 = vdwg.mxu0
      %v729 = vadd.f32 %v656, %v723
      %v730 = vadd.f32 %v657, %v725
      %731 = vrot.lane.b32.xlu0 %v307, 113
      %v732 = vpop.permute.xlu0 %731
      %733 = vrot.lane.b32.xlu0 %v308, 113
      %v734 = vpop.permute.xlu0 %733
      %vm735 = vcmp.lt.s32.totalorder %v316, 113
      %v736 = vsel %vm735, %v732, %v734
      %v737 = vsel %vm735, %v734, %v732
      %v738 = vlaneseq
      %v739 = vshrl.u32 %v738, 7
      %v740 = vsub.s32 5, %v739
      %v741 = vrot.slane %v309, %v740
      %v742 = vlaneseq
      %v743 = vshrl.u32 %v742, 7
      %v744 = vsub.s32 5, %v743
      %v745 = vrot.slane %v310, %v744
      %v746 = vmul.f32 %v736, %v741
      %v747 = vmul.f32 %v737, %v745
      %s748 = scalar_lea.vmem %s2, 24
      %v749 = vld [vmem:[%s748] sm:$0xf]
      %v750 = vpack.c.bf16 %v746, %v746
      %v751 = vpack.c.bf16 %v747, %v747
      %v753 = vsel %vm354, %v749, 0
      %v756 = vsel %vm358, %v750, 0
      %v759 = vsel %vm358, %v751, 0
      %761 = vmatprep.subr.bf16.mxu0 0
      %762 = vmatpush1.bf16.msra.mxu0 0
      %763 = vmatprep.subr.bf16.mxu0 0
      %764 = vmatpush1.bf16.msra.mxu0 0
      %765 = vmatprep.subr.bf16.mxu0 0
      %766 = vmatpush1.bf16.msra.mxu0 0
      %767 = vmatprep.subr.bf16.mxu0 0
      %768 = vmatpush1.bf16.msra.mxu0 0
      %769 = vmatprep.subr.bf16.mxu0 0
      %770 = vmatpush1.bf16.msra.mxu0 0
      %771 = vmatprep.subr.bf16.mxu0 0
      %772 = vmatpush1.bf16.msra.mxu0 0
      %773 = vmatprep.subr.bf16.mxu0 0
      %774 = vmatpush1.bf16.msra.mxu0 0
      %775 = vmatprep.subr.bf16.mxu0 %v759
      %776 = vmatpush1.bf16.msra.mxu0 %v756
      %777 = vmatprep.subr.bf16.mxu0 0
      %778 = vmatpush2.bf16.msra.mxu0 0
      %779 = vmatprep.subr.bf16.mxu0 0
      %780 = vmatpush2.bf16.msra.mxu0 0
      %781 = vmatprep.subr.bf16.mxu0 0
      %782 = vmatpush2.bf16.msra.mxu0 0
      %783 = vmatprep.subr.bf16.mxu0 0
      %784 = vmatpush2.bf16.msra.mxu0 0
      %785 = vmatprep.subr.bf16.mxu0 0
      %786 = vmatpush2.bf16.msra.mxu0 0
      %787 = vmatprep.subr.bf16.mxu0 0
      %788 = vmatpush2.bf16.msra.mxu0 0
      %789 = vmatprep.subr.bf16.mxu0 0
      %790 = vmatpush2.bf16.msra.mxu0 0
      %791 = vmatprep.subr.bf16.mxu0 0
      %792 = vmatpush2.bf16.msra.mxu0 0
      %793 = vmatprep.mubr.bf16.mxu0 0
      %794 = vmatmul.mubr.bf16.gmra.mxu0 %v753
      %v795 = vpop.f32.mrf.mxu0
      %v796 = vadd.f32 0.0, %v795
      %v797 = vpop.f32.mrf.mxu0
      %v798 = vadd.f32 0.0, %v797
      %v799 = vpop.f32.mrf.mxu0
      %v800 = vpop.f32.mrf.mxu0
      %801 = vdwg.mxu0
      %v802 = vadd.f32 %v729, %v796
      %v803 = vadd.f32 %v730, %v798
      %804 = vrot.lane.b32.xlu0 %v307, 112
      %v805 = vpop.permute.xlu0 %804
      %806 = vrot.lane.b32.xlu0 %v308, 112
      %v807 = vpop.permute.xlu0 %806
      %vm808 = vcmp.lt.s32.totalorder %v316, 112
      %v809 = vsel %vm808, %v805, %v807
      %v810 = vsel %vm808, %v807, %v805
      %v811 = vlaneseq
      %v812 = vshrl.u32 %v811, 7
      %v813 = vsub.s32 6, %v812
      %v814 = vrot.slane %v309, %v813
      %v815 = vlaneseq
      %v816 = vshrl.u32 %v815, 7
      %v817 = vsub.s32 6, %v816
      %v818 = vrot.slane %v310, %v817
      %v819 = vmul.f32 %v809, %v814
      %v820 = vmul.f32 %v810, %v818
      %s821 = scalar_lea.vmem %s2, 28
      %v822 = vld [vmem:[%s821] sm:$0xf]
      %v823 = vpack.c.bf16 %v819, %v819
      %v824 = vpack.c.bf16 %v820, %v820
      %v826 = vsel %vm354, %v822, 0
      %v829 = vsel %vm358, %v823, 0
      %v832 = vsel %vm358, %v824, 0
      %834 = vmatprep.subr.bf16.mxu0 0
      %835 = vmatpush1.bf16.msra.mxu0 0
      %836 = vmatprep.subr.bf16.mxu0 0
      %837 = vmatpush1.bf16.msra.mxu0 0
      %838 = vmatprep.subr.bf16.mxu0 0
      %839 = vmatpush1.bf16.msra.mxu0 0
      %840 = vmatprep.subr.bf16.mxu0 0
      %841 = vmatpush1.bf16.msra.mxu0 0
      %842 = vmatprep.subr.bf16.mxu0 0
      %843 = vmatpush1.bf16.msra.mxu0 0
      %844 = vmatprep.subr.bf16.mxu0 0
      %845 = vmatpush1.bf16.msra.mxu0 0
      %846 = vmatprep.subr.bf16.mxu0 0
      %847 = vmatpush1.bf16.msra.mxu0 0
      %848 = vmatprep.subr.bf16.mxu0 %v832
      %849 = vmatpush1.bf16.msra.mxu0 %v829
      %850 = vmatprep.subr.bf16.mxu0 0
      %851 = vmatpush2.bf16.msra.mxu0 0
      %852 = vmatprep.subr.bf16.mxu0 0
      %853 = vmatpush2.bf16.msra.mxu0 0
      %854 = vmatprep.subr.bf16.mxu0 0
      %855 = vmatpush2.bf16.msra.mxu0 0
      %856 = vmatprep.subr.bf16.mxu0 0
      %857 = vmatpush2.bf16.msra.mxu0 0
      %858 = vmatprep.subr.bf16.mxu0 0
      %859 = vmatpush2.bf16.msra.mxu0 0
      %860 = vmatprep.subr.bf16.mxu0 0
      %861 = vmatpush2.bf16.msra.mxu0 0
      %862 = vmatprep.subr.bf16.mxu0 0
      %863 = vmatpush2.bf16.msra.mxu0 0
      %864 = vmatprep.subr.bf16.mxu0 0
      %865 = vmatpush2.bf16.msra.mxu0 0
      %866 = vmatprep.mubr.bf16.mxu0 0
      %867 = vmatmul.mubr.bf16.gmra.mxu0 %v826
      %v868 = vpop.f32.mrf.mxu0
      %v869 = vadd.f32 0.0, %v868
      %v870 = vpop.f32.mrf.mxu0
      %v871 = vadd.f32 0.0, %v870
      %v872 = vpop.f32.mrf.mxu0
      %v873 = vpop.f32.mrf.mxu0
      %874 = vdwg.mxu0
      %v875 = vadd.f32 %v802, %v869
      %v876 = vadd.f32 %v803, %v871
      %877 = vrot.lane.b32.xlu0 %v307, 111
      %v878 = vpop.permute.xlu0 %877
      %879 = vrot.lane.b32.xlu0 %v308, 111
      %v880 = vpop.permute.xlu0 %879
      %vm881 = vcmp.lt.s32.totalorder %v316, 111
      %v882 = vsel %vm881, %v878, %v880
      %v883 = vsel %vm881, %v880, %v878
      %v884 = vlaneseq
      %v885 = vshrl.u32 %v884, 7
      %v886 = vsub.s32 7, %v885
      %v887 = vrot.slane %v309, %v886
      %v888 = vlaneseq
      %v889 = vshrl.u32 %v888, 7
      %v890 = vsub.s32 7, %v889
      %v891 = vrot.slane %v310, %v890
      %v892 = vmul.f32 %v882, %v887
      %v893 = vmul.f32 %v883, %v891
      %s894 = scalar_lea.vmem %s2, 32
      %v895 = vld [vmem:[%s894] sm:$0xf]
      %v896 = vpack.c.bf16 %v892, %v892
      %v897 = vpack.c.bf16 %v893, %v893
      %v899 = vsel %vm354, %v895, 0
      %v902 = vsel %vm358, %v896, 0
      %v905 = vsel %vm358, %v897, 0
      %907 = vmatprep.subr.bf16.mxu0 0
      %908 = vmatpush1.bf16.msra.mxu0 0
      %909 = vmatprep.subr.bf16.mxu0 0
      %910 = vmatpush1.bf16.msra.mxu0 0
      %911 = vmatprep.subr.bf16.mxu0 0
      %912 = vmatpush1.bf16.msra.mxu0 0
      %913 = vmatprep.subr.bf16.mxu0 0
      %914 = vmatpush1.bf16.msra.mxu0 0
      %915 = vmatprep.subr.bf16.mxu0 0
      %916 = vmatpush1.bf16.msra.mxu0 0
      %917 = vmatprep.subr.bf16.mxu0 0
      %918 = vmatpush1.bf16.msra.mxu0 0
      %919 = vmatprep.subr.bf16.mxu0 0
      %920 = vmatpush1.bf16.msra.mxu0 0
      %921 = vmatprep.subr.bf16.mxu0 %v905
      %922 = vmatpush1.bf16.msra.mxu0 %v902
      %923 = vmatprep.subr.bf16.mxu0 0
      %924 = vmatpush2.bf16.msra.mxu0 0
      %925 = vmatprep.subr.bf16.mxu0 0
      %926 = vmatpush2.bf16.msra.mxu0 0
      %927 = vmatprep.subr.bf16.mxu0 0
      %928 = vmatpush2.bf16.msra.mxu0 0
      %929 = vmatprep.subr.bf16.mxu0 0
      %930 = vmatpush2.bf16.msra.mxu0 0
      %931 = vmatprep.subr.bf16.mxu0 0
      %932 = vmatpush2.bf16.msra.mxu0 0
      %933 = vmatprep.subr.bf16.mxu0 0
      %934 = vmatpush2.bf16.msra.mxu0 0
      %935 = vmatprep.subr.bf16.mxu0 0
      %936 = vmatpush2.bf16.msra.mxu0 0
      %937 = vmatprep.subr.bf16.mxu0 0
      %938 = vmatpush2.bf16.msra.mxu0 0
      %939 = vmatprep.mubr.bf16.mxu0 0
      %940 = vmatmul.mubr.bf16.gmra.mxu0 %v899
      %v941 = vpop.f32.mrf.mxu0
      %v942 = vadd.f32 0.0, %v941
      %v943 = vpop.f32.mrf.mxu0
      %v944 = vadd.f32 0.0, %v943
      %v945 = vpop.f32.mrf.mxu0
      %v946 = vpop.f32.mrf.mxu0
      %947 = vdwg.mxu0
      %v948 = vadd.f32 %v875, %v942
      %v949 = vadd.f32 %v876, %v944
      %v950 = vld [vmem:[%s3] sm:$0xff]
      %952 = vset.pattern.permute.xlu0 0
      %953 = vperm.xlu0 %952, %v950
      %v954 = vpop.permute.xlu0 %953
      %v956 = vadd.f32 %v948, %v954
      %v957 = vadd.f32 %v949, %v954
      %v958 = vmax.f32 %v956, 0.0
      %v959 = vmax.f32 %v957, 0.0
      %960 = vrot.lane.b32.xlu0 %v958, 17
      %v961 = vpop.permute.xlu0 %960
      %962 = vrot.lane.b32.xlu0 %v959, 17
      %v963 = vpop.permute.xlu0 %962
      %v964 = vsel %vm317, %v961, %v963
      %v965 = vsel %vm317, %v963, %v961
      %v966 = vmul.f32 %v965, %v323
      %v967 = vmul.f32 %v964, %v327
      %v968 = vld [vmem:[%s4] sm:$0xf]
      %v969 = vpack.c.bf16 %v966, %v966
      %v970 = vpack.c.bf16 %v967, %v967
      %971 = vrot.lane.b32.xlu0 %v958, 16
      %v972 = vpop.permute.xlu0 %971
      %973 = vrot.lane.b32.xlu0 %v959, 16
      %v974 = vpop.permute.xlu0 %973
      %v975 = vsel %vm337, %v972, %v974
      %v976 = vsel %vm337, %v974, %v972
      %v977 = vmul.f32 %v976, %v343
      %v978 = vmul.f32 %v975, %v347
      %s979 = scalar_lea.vmem %s4, 4
      %v980 = vld [vmem:[%s979] sm:$0xf]
      %v981 = vpack.c.bf16 %v977, %v977
      %v982 = vpack.c.bf16 %v978, %v978
      %v984 = vsel %vm354, %v980, 0
      %v987 = vsel %vm358, %v981, 0
      %v990 = vsel %vm358, %v982, 0
      %992 = vmatprep.subr.bf16.mxu0 0
      %993 = vmatpush1.bf16.msra.mxu0 0
      %994 = vmatprep.subr.bf16.mxu0 0
      %995 = vmatpush1.bf16.msra.mxu0 0
      %996 = vmatprep.subr.bf16.mxu0 0
      %997 = vmatpush1.bf16.msra.mxu0 0
      %998 = vmatprep.subr.bf16.mxu0 0
      %999 = vmatpush1.bf16.msra.mxu0 0
      %1000 = vmatprep.subr.bf16.mxu0 0
      %1001 = vmatpush1.bf16.msra.mxu0 0
      %1002 = vmatprep.subr.bf16.mxu0 0
      %1003 = vmatpush1.bf16.msra.mxu0 0
      %1004 = vmatprep.subr.bf16.mxu0 0
      %1005 = vmatpush1.bf16.msra.mxu0 0
      %1006 = vmatprep.subr.bf16.mxu0 %v990
      %1007 = vmatpush1.bf16.msra.mxu0 %v987
      %1008 = vmatprep.subr.bf16.mxu0 0
      %1009 = vmatpush2.bf16.msra.mxu0 0
      %1010 = vmatprep.subr.bf16.mxu0 0
      %1011 = vmatpush2.bf16.msra.mxu0 0
      %1012 = vmatprep.subr.bf16.mxu0 0
      %1013 = vmatpush2.bf16.msra.mxu0 0
      %1014 = vmatprep.subr.bf16.mxu0 0
      %1015 = vmatpush2.bf16.msra.mxu0 0
      %1016 = vmatprep.subr.bf16.mxu0 0
      %1017 = vmatpush2.bf16.msra.mxu0 0
      %1018 = vmatprep.subr.bf16.mxu0 0
      %1019 = vmatpush2.bf16.msra.mxu0 0
      %1020 = vmatprep.subr.bf16.mxu0 0
      %1021 = vmatpush2.bf16.msra.mxu0 0
      %1022 = vmatprep.subr.bf16.mxu0 0
      %1023 = vmatpush2.bf16.msra.mxu0 0
      %1024 = vmatprep.mubr.bf16.mxu0 0
      %1025 = vmatmul.mubr.bf16.gmra.mxu0 %v984
      %v1026 = vpop.f32.mrf.mxu0
      %v1027 = vadd.f32 0.0, %v1026
      %v1028 = vpop.f32.mrf.mxu0
      %v1029 = vadd.f32 0.0, %v1028
      %v1030 = vpop.f32.mrf.mxu0
      %v1031 = vpop.f32.mrf.mxu0
      %1032 = vdwg.mxu0
      %v1034 = vsel %vm354, %v968, 0
      %v1037 = vsel %vm358, %v969, 0
      %v1040 = vsel %vm358, %v970, 0
      %1042 = vmatprep.subr.bf16.mxu0 0
      %1043 = vmatpush1.bf16.msra.mxu0 0
      %1044 = vmatprep.subr.bf16.mxu0 0
      %1045 = vmatpush1.bf16.msra.mxu0 0
      %1046 = vmatprep.subr.bf16.mxu0 0
      %1047 = vmatpush1.bf16.msra.mxu0 0
      %1048 = vmatprep.subr.bf16.mxu0 0
      %1049 = vmatpush1.bf16.msra.mxu0 0
      %1050 = vmatprep.subr.bf16.mxu0 0
      %1051 = vmatpush1.bf16.msra.mxu0 0
      %1052 = vmatprep.subr.bf16.mxu0 0
      %1053 = vmatpush1.bf16.msra.mxu0 0
      %1054 = vmatprep.subr.bf16.mxu0 0
      %1055 = vmatpush1.bf16.msra.mxu0 0
      %1056 = vmatprep.subr.bf16.mxu0 %v1040
      %1057 = vmatpush1.bf16.msra.mxu0 %v1037
      %1058 = vmatprep.subr.bf16.mxu0 0
      %1059 = vmatpush2.bf16.msra.mxu0 0
      %1060 = vmatprep.subr.bf16.mxu0 0
      %1061 = vmatpush2.bf16.msra.mxu0 0
      %1062 = vmatprep.subr.bf16.mxu0 0
      %1063 = vmatpush2.bf16.msra.mxu0 0
      %1064 = vmatprep.subr.bf16.mxu0 0
      %1065 = vmatpush2.bf16.msra.mxu0 0
      %1066 = vmatprep.subr.bf16.mxu0 0
      %1067 = vmatpush2.bf16.msra.mxu0 0
      %1068 = vmatprep.subr.bf16.mxu0 0
      %1069 = vmatpush2.bf16.msra.mxu0 0
      %1070 = vmatprep.subr.bf16.mxu0 0
      %1071 = vmatpush2.bf16.msra.mxu0 0
      %1072 = vmatprep.subr.bf16.mxu0 0
      %1073 = vmatpush2.bf16.msra.mxu0 0
      %1074 = vmatprep.mubr.bf16.mxu0 0
      %1075 = vmatmul.mubr.bf16.gmra.mxu0 %v1034
      %v1076 = vpop.f32.mrf.mxu0
      %v1077 = vadd.f32 %v1027, %v1076
      %v1078 = vpop.f32.mrf.mxu0
      %v1079 = vadd.f32 %v1029, %v1078
      %v1080 = vpop.f32.mrf.mxu0
      %v1081 = vpop.f32.mrf.mxu0
      %1082 = vdwg.mxu0
      %1083 = vrot.lane.b32.xlu0 %v958, 15
      %v1084 = vpop.permute.xlu0 %1083
      %1085 = vrot.lane.b32.xlu0 %v959, 15
      %v1086 = vpop.permute.xlu0 %1085
      %v1087 = vsel %vm460, %v1084, %v1086
      %v1088 = vsel %vm460, %v1086, %v1084
      %v1089 = vmul.f32 %v1088, %v466
      %v1090 = vmul.f32 %v1087, %v470
      %s1091 = scalar_lea.vmem %s4, 8
      %v1092 = vld [vmem:[%s1091] sm:$0xf]
      %v1093 = vpack.c.bf16 %v1089, %v1089
      %v1094 = vpack.c.bf16 %v1090, %v1090
      %v1096 = vsel %vm354, %v1092, 0
      %v1099 = vsel %vm358, %v1093, 0
      %v1102 = vsel %vm358, %v1094, 0
      %1104 = vmatprep.subr.bf16.mxu0 0
      %1105 = vmatpush1.bf16.msra.mxu0 0
      %1106 = vmatprep.subr.bf16.mxu0 0
      %1107 = vmatpush1.bf16.msra.mxu0 0
      %1108 = vmatprep.subr.bf16.mxu0 0
      %1109 = vmatpush1.bf16.msra.mxu0 0
      %1110 = vmatprep.subr.bf16.mxu0 0
      %1111 = vmatpush1.bf16.msra.mxu0 0
      %1112 = vmatprep.subr.bf16.mxu0 0
      %1113 = vmatpush1.bf16.msra.mxu0 0
      %1114 = vmatprep.subr.bf16.mxu0 0
      %1115 = vmatpush1.bf16.msra.mxu0 0
      %1116 = vmatprep.subr.bf16.mxu0 0
      %1117 = vmatpush1.bf16.msra.mxu0 0
      %1118 = vmatprep.subr.bf16.mxu0 %v1102
      %1119 = vmatpush1.bf16.msra.mxu0 %v1099
      %1120 = vmatprep.subr.bf16.mxu0 0
      %1121 = vmatpush2.bf16.msra.mxu0 0
      %1122 = vmatprep.subr.bf16.mxu0 0
      %1123 = vmatpush2.bf16.msra.mxu0 0
      %1124 = vmatprep.subr.bf16.mxu0 0
      %1125 = vmatpush2.bf16.msra.mxu0 0
      %1126 = vmatprep.subr.bf16.mxu0 0
      %1127 = vmatpush2.bf16.msra.mxu0 0
      %1128 = vmatprep.subr.bf16.mxu0 0
      %1129 = vmatpush2.bf16.msra.mxu0 0
      %1130 = vmatprep.subr.bf16.mxu0 0
      %1131 = vmatpush2.bf16.msra.mxu0 0
      %1132 = vmatprep.subr.bf16.mxu0 0
      %1133 = vmatpush2.bf16.msra.mxu0 0
      %1134 = vmatprep.subr.bf16.mxu0 0
      %1135 = vmatpush2.bf16.msra.mxu0 0
      %1136 = vmatprep.mubr.bf16.mxu0 0
      %1137 = vmatmul.mubr.bf16.gmra.mxu0 %v1096
      %v1138 = vpop.f32.mrf.mxu0
      %v1139 = vadd.f32 0.0, %v1138
      %v1140 = vpop.f32.mrf.mxu0
      %v1141 = vadd.f32 0.0, %v1140
      %v1142 = vpop.f32.mrf.mxu0
      %v1143 = vpop.f32.mrf.mxu0
      %1144 = vdwg.mxu0
      %v1145 = vadd.f32 %v1077, %v1139
      %v1146 = vadd.f32 %v1079, %v1141
      %1147 = vrot.lane.b32.xlu0 %v958, 1
      %v1148 = vpop.permute.xlu0 %1147
      %1149 = vrot.lane.b32.xlu0 %v959, 1
      %v1150 = vpop.permute.xlu0 %1149
      %v1151 = vsel %vm533, %v1148, %v1150
      %v1152 = vsel %vm533, %v1150, %v1148
      %v1153 = vmul.f32 %v1152, %v539
      %v1154 = vmul.f32 %v1151, %v543
      %s1155 = scalar_lea.vmem %s4, 12
      %v1156 = vld [vmem:[%s1155] sm:$0xf]
      %v1157 = vpack.c.bf16 %v1153, %v1153
      %v1158 = vpack.c.bf16 %v1154, %v1154
      %v1160 = vsel %vm354, %v1156, 0
      %v1163 = vsel %vm358, %v1157, 0
      %v1166 = vsel %vm358, %v1158, 0
      %1168 = vmatprep.subr.bf16.mxu0 0
      %1169 = vmatpush1.bf16.msra.mxu0 0
      %1170 = vmatprep.subr.bf16.mxu0 0
      %1171 = vmatpush1.bf16.msra.mxu0 0
      %1172 = vmatprep.subr.bf16.mxu0 0
      %1173 = vmatpush1.bf16.msra.mxu0 0
      %1174 = vmatprep.subr.bf16.mxu0 0
      %1175 = vmatpush1.bf16.msra.mxu0 0
      %1176 = vmatprep.subr.bf16.mxu0 0
      %1177 = vmatpush1.bf16.msra.mxu0 0
      %1178 = vmatprep.subr.bf16.mxu0 0
      %1179 = vmatpush1.bf16.msra.mxu0 0
      %1180 = vmatprep.subr.bf16.mxu0 0
      %1181 = vmatpush1.bf16.msra.mxu0 0
      %1182 = vmatprep.subr.bf16.mxu0 %v1166
      %1183 = vmatpush1.bf16.msra.mxu0 %v1163
      %1184 = vmatprep.subr.bf16.mxu0 0
      %1185 = vmatpush2.bf16.msra.mxu0 0
      %1186 = vmatprep.subr.bf16.mxu0 0
      %1187 = vmatpush2.bf16.msra.mxu0 0
      %1188 = vmatprep.subr.bf16.mxu0 0
      %1189 = vmatpush2.bf16.msra.mxu0 0
      %1190 = vmatprep.subr.bf16.mxu0 0
      %1191 = vmatpush2.bf16.msra.mxu0 0
      %1192 = vmatprep.subr.bf16.mxu0 0
      %1193 = vmatpush2.bf16.msra.mxu0 0
      %1194 = vmatprep.subr.bf16.mxu0 0
      %1195 = vmatpush2.bf16.msra.mxu0 0
      %1196 = vmatprep.subr.bf16.mxu0 0
      %1197 = vmatpush2.bf16.msra.mxu0 0
      %1198 = vmatprep.subr.bf16.mxu0 0
      %1199 = vmatpush2.bf16.msra.mxu0 0
      %1200 = vmatprep.mubr.bf16.mxu0 0
      %1201 = vmatmul.mubr.bf16.gmra.mxu0 %v1160
      %v1202 = vpop.f32.mrf.mxu0
      %v1203 = vadd.f32 0.0, %v1202
      %v1204 = vpop.f32.mrf.mxu0
      %v1205 = vadd.f32 0.0, %v1204
      %v1206 = vpop.f32.mrf.mxu0
      %v1207 = vpop.f32.mrf.mxu0
      %1208 = vdwg.mxu0
      %v1209 = vadd.f32 %v1145, %v1203
      %v1210 = vadd.f32 %v1146, %v1205
      %s1211 = scalar_lea.vmem %s4, 16
      %v1212 = vld [vmem:[%s1211] sm:$0xf]
      %v1213 = vpack.c.bf16 %v958, %v958
      %v1214 = vpack.c.bf16 %v959, %v959
      %v1216 = vsel %vm354, %v1212, 0
      %v1219 = vsel %vm358, %v1213, 0
      %v1222 = vsel %vm358, %v1214, 0
      %1224 = vmatprep.subr.bf16.mxu0 0
      %1225 = vmatpush1.bf16.msra.mxu0 0
      %1226 = vmatprep.subr.bf16.mxu0 0
      %1227 = vmatpush1.bf16.msra.mxu0 0
      %1228 = vmatprep.subr.bf16.mxu0 0
      %1229 = vmatpush1.bf16.msra.mxu0 0
      %1230 = vmatprep.subr.bf16.mxu0 0
      %1231 = vmatpush1.bf16.msra.mxu0 0
      %1232 = vmatprep.subr.bf16.mxu0 0
      %1233 = vmatpush1.bf16.msra.mxu0 0
      %1234 = vmatprep.subr.bf16.mxu0 0
      %1235 = vmatpush1.bf16.msra.mxu0 0
      %1236 = vmatprep.subr.bf16.mxu0 0
      %1237 = vmatpush1.bf16.msra.mxu0 0
      %1238 = vmatprep.subr.bf16.mxu0 %v1222
      %1239 = vmatpush1.bf16.msra.mxu0 %v1219
      %1240 = vmatprep.subr.bf16.mxu0 0
      %1241 = vmatpush2.bf16.msra.mxu0 0
      %1242 = vmatprep.subr.bf16.mxu0 0
      %1243 = vmatpush2.bf16.msra.mxu0 0
      %1244 = vmatprep.subr.bf16.mxu0 0
      %1245 = vmatpush2.bf16.msra.mxu0 0
      %1246 = vmatprep.subr.bf16.mxu0 0
      %1247 = vmatpush2.bf16.msra.mxu0 0
      %1248 = vmatprep.subr.bf16.mxu0 0
      %1249 = vmatpush2.bf16.msra.mxu0 0
      %1250 = vmatprep.subr.bf16.mxu0 0
      %1251 = vmatpush2.bf16.msra.mxu0 0
      %1252 = vmatprep.subr.bf16.mxu0 0
      %1253 = vmatpush2.bf16.msra.mxu0 0
      %1254 = vmatprep.subr.bf16.mxu0 0
      %1255 = vmatpush2.bf16.msra.mxu0 0
      %1256 = vmatprep.mubr.bf16.mxu0 0
      %1257 = vmatmul.mubr.bf16.gmra.mxu0 %v1216
      %v1258 = vpop.f32.mrf.mxu0
      %v1259 = vadd.f32 0.0, %v1258
      %v1260 = vpop.f32.mrf.mxu0
      %v1261 = vadd.f32 0.0, %v1260
      %v1262 = vpop.f32.mrf.mxu0
      %v1263 = vpop.f32.mrf.mxu0
      %1264 = vdwg.mxu0
      %v1265 = vadd.f32 %v1209, %v1259
      %v1266 = vadd.f32 %v1210, %v1261
      %1267 = vrot.lane.b32.xlu0 %v958, 127
      %v1268 = vpop.permute.xlu0 %1267
      %1269 = vrot.lane.b32.xlu0 %v959, 127
      %v1270 = vpop.permute.xlu0 %1269
      %v1271 = vsel %vm662, %v1268, %v1270
      %v1272 = vsel %vm662, %v1270, %v1268
      %v1273 = vmul.f32 %v1271, %v668
      %v1274 = vmul.f32 %v1272, %v672
      %s1275 = scalar_lea.vmem %s4, 20
      %v1276 = vld [vmem:[%s1275] sm:$0xf]
      %v1277 = vpack.c.bf16 %v1273, %v1273
      %v1278 = vpack.c.bf16 %v1274, %v1274
      %v1280 = vsel %vm354, %v1276, 0
      %v1283 = vsel %vm358, %v1277, 0
      %v1286 = vsel %vm358, %v1278, 0
      %1288 = vmatprep.subr.bf16.mxu0 0
      %1289 = vmatpush1.bf16.msra.mxu0 0
      %1290 = vmatprep.subr.bf16.mxu0 0
      %1291 = vmatpush1.bf16.msra.mxu0 0
      %1292 = vmatprep.subr.bf16.mxu0 0
      %1293 = vmatpush1.bf16.msra.mxu0 0
      %1294 = vmatprep.subr.bf16.mxu0 0
      %1295 = vmatpush1.bf16.msra.mxu0 0
      %1296 = vmatprep.subr.bf16.mxu0 0
      %1297 = vmatpush1.bf16.msra.mxu0 0
      %1298 = vmatprep.subr.bf16.mxu0 0
      %1299 = vmatpush1.bf16.msra.mxu0 0
      %1300 = vmatprep.subr.bf16.mxu0 0
      %1301 = vmatpush1.bf16.msra.mxu0 0
      %1302 = vmatprep.subr.bf16.mxu0 %v1286
      %1303 = vmatpush1.bf16.msra.mxu0 %v1283
      %1304 = vmatprep.subr.bf16.mxu0 0
      %1305 = vmatpush2.bf16.msra.mxu0 0
      %1306 = vmatprep.subr.bf16.mxu0 0
      %1307 = vmatpush2.bf16.msra.mxu0 0
      %1308 = vmatprep.subr.bf16.mxu0 0
      %1309 = vmatpush2.bf16.msra.mxu0 0
      %1310 = vmatprep.subr.bf16.mxu0 0
      %1311 = vmatpush2.bf16.msra.mxu0 0
      %1312 = vmatprep.subr.bf16.mxu0 0
      %1313 = vmatpush2.bf16.msra.mxu0 0
      %1314 = vmatprep.subr.bf16.mxu0 0
      %1315 = vmatpush2.bf16.msra.mxu0 0
      %1316 = vmatprep.subr.bf16.mxu0 0
      %1317 = vmatpush2.bf16.msra.mxu0 0
      %1318 = vmatprep.subr.bf16.mxu0 0
      %1319 = vmatpush2.bf16.msra.mxu0 0
      %1320 = vmatprep.mubr.bf16.mxu0 0
      %1321 = vmatmul.mubr.bf16.gmra.mxu0 %v1280
      %v1322 = vpop.f32.mrf.mxu0
      %v1323 = vadd.f32 0.0, %v1322
      %v1324 = vpop.f32.mrf.mxu0
      %v1325 = vadd.f32 0.0, %v1324
      %v1326 = vpop.f32.mrf.mxu0
      %v1327 = vpop.f32.mrf.mxu0
      %1328 = vdwg.mxu0
      %v1329 = vadd.f32 %v1265, %v1323
      %v1330 = vadd.f32 %v1266, %v1325
      %1331 = vrot.lane.b32.xlu0 %v958, 113
      %v1332 = vpop.permute.xlu0 %1331
      %1333 = vrot.lane.b32.xlu0 %v959, 113
      %v1334 = vpop.permute.xlu0 %1333
      %v1335 = vsel %vm735, %v1332, %v1334
      %v1336 = vsel %vm735, %v1334, %v1332
      %v1337 = vmul.f32 %v1335, %v741
      %v1338 = vmul.f32 %v1336, %v745
      %s1339 = scalar_lea.vmem %s4, 24
      %v1340 = vld [vmem:[%s1339] sm:$0xf]
      %v1341 = vpack.c.bf16 %v1337, %v1337
      %v1342 = vpack.c.bf16 %v1338, %v1338
      %v1344 = vsel %vm354, %v1340, 0
      %v1347 = vsel %vm358, %v1341, 0
      %v1350 = vsel %vm358, %v1342, 0
      %1352 = vmatprep.subr.bf16.mxu0 0
      %1353 = vmatpush1.bf16.msra.mxu0 0
      %1354 = vmatprep.subr.bf16.mxu0 0
      %1355 = vmatpush1.bf16.msra.mxu0 0
      %1356 = vmatprep.subr.bf16.mxu0 0
      %1357 = vmatpush1.bf16.msra.mxu0 0
      %1358 = vmatprep.subr.bf16.mxu0 0
      %1359 = vmatpush1.bf16.msra.mxu0 0
      %1360 = vmatprep.subr.bf16.mxu0 0
      %1361 = vmatpush1.bf16.msra.mxu0 0
      %1362 = vmatprep.subr.bf16.mxu0 0
      %1363 = vmatpush1.bf16.msra.mxu0 0
      %1364 = vmatprep.subr.bf16.mxu0 0
      %1365 = vmatpush1.bf16.msra.mxu0 0
      %1366 = vmatprep.subr.bf16.mxu0 %v1350
      %1367 = vmatpush1.bf16.msra.mxu0 %v1347
      %1368 = vmatprep.subr.bf16.mxu0 0
      %1369 = vmatpush2.bf16.msra.mxu0 0
      %1370 = vmatprep.subr.bf16.mxu0 0
      %1371 = vmatpush2.bf16.msra.mxu0 0
      %1372 = vmatprep.subr.bf16.mxu0 0
      %1373 = vmatpush2.bf16.msra.mxu0 0
      %1374 = vmatprep.subr.bf16.mxu0 0
      %1375 = vmatpush2.bf16.msra.mxu0 0
      %1376 = vmatprep.subr.bf16.mxu0 0
      %1377 = vmatpush2.bf16.msra.mxu0 0
      %1378 = vmatprep.subr.bf16.mxu0 0
      %1379 = vmatpush2.bf16.msra.mxu0 0
      %1380 = vmatprep.subr.bf16.mxu0 0
      %1381 = vmatpush2.bf16.msra.mxu0 0
      %1382 = vmatprep.subr.bf16.mxu0 0
      %1383 = vmatpush2.bf16.msra.mxu0 0
      %1384 = vmatprep.mubr.bf16.mxu0 0
      %1385 = vmatmul.mubr.bf16.gmra.mxu0 %v1344
      %v1386 = vpop.f32.mrf.mxu0
      %v1387 = vadd.f32 0.0, %v1386
      %v1388 = vpop.f32.mrf.mxu0
      %v1389 = vadd.f32 0.0, %v1388
      %v1390 = vpop.f32.mrf.mxu0
      %v1391 = vpop.f32.mrf.mxu0
      %1392 = vdwg.mxu0
      %v1393 = vadd.f32 %v1329, %v1387
      %v1394 = vadd.f32 %v1330, %v1389
      %1395 = vrot.lane.b32.xlu0 %v958, 112
      %v1396 = vpop.permute.xlu0 %1395
      %1397 = vrot.lane.b32.xlu0 %v959, 112
      %v1398 = vpop.permute.xlu0 %1397
      %v1399 = vsel %vm808, %v1396, %v1398
      %v1400 = vsel %vm808, %v1398, %v1396
      %v1401 = vmul.f32 %v1399, %v814
      %v1402 = vmul.f32 %v1400, %v818
      %s1403 = scalar_lea.vmem %s4, 28
      %v1404 = vld [vmem:[%s1403] sm:$0xf]
      %v1405 = vpack.c.bf16 %v1401, %v1401
      %v1406 = vpack.c.bf16 %v1402, %v1402
      %v1408 = vsel %vm354, %v1404, 0
      %v1411 = vsel %vm358, %v1405, 0
      %v1414 = vsel %vm358, %v1406, 0
      %1416 = vmatprep.subr.bf16.mxu0 0
      %1417 = vmatpush1.bf16.msra.mxu0 0
      %1418 = vmatprep.subr.bf16.mxu0 0
      %1419 = vmatpush1.bf16.msra.mxu0 0
      %1420 = vmatprep.subr.bf16.mxu0 0
      %1421 = vmatpush1.bf16.msra.mxu0 0
      %1422 = vmatprep.subr.bf16.mxu0 0
      %1423 = vmatpush1.bf16.msra.mxu0 0
      %1424 = vmatprep.subr.bf16.mxu0 0
      %1425 = vmatpush1.bf16.msra.mxu0 0
      %1426 = vmatprep.subr.bf16.mxu0 0
      %1427 = vmatpush1.bf16.msra.mxu0 0
      %1428 = vmatprep.subr.bf16.mxu0 0
      %1429 = vmatpush1.bf16.msra.mxu0 0
      %1430 = vmatprep.subr.bf16.mxu0 %v1414
      %1431 = vmatpush1.bf16.msra.mxu0 %v1411
      %1432 = vmatprep.subr.bf16.mxu0 0
      %1433 = vmatpush2.bf16.msra.mxu0 0
      %1434 = vmatprep.subr.bf16.mxu0 0
      %1435 = vmatpush2.bf16.msra.mxu0 0
      %1436 = vmatprep.subr.bf16.mxu0 0
      %1437 = vmatpush2.bf16.msra.mxu0 0
      %1438 = vmatprep.subr.bf16.mxu0 0
      %1439 = vmatpush2.bf16.msra.mxu0 0
      %1440 = vmatprep.subr.bf16.mxu0 0
      %1441 = vmatpush2.bf16.msra.mxu0 0
      %1442 = vmatprep.subr.bf16.mxu0 0
      %1443 = vmatpush2.bf16.msra.mxu0 0
      %1444 = vmatprep.subr.bf16.mxu0 0
      %1445 = vmatpush2.bf16.msra.mxu0 0
      %1446 = vmatprep.subr.bf16.mxu0 0
      %1447 = vmatpush2.bf16.msra.mxu0 0
      %1448 = vmatprep.mubr.bf16.mxu0 0
      %1449 = vmatmul.mubr.bf16.gmra.mxu0 %v1408
      %v1450 = vpop.f32.mrf.mxu0
      %v1451 = vadd.f32 0.0, %v1450
      %v1452 = vpop.f32.mrf.mxu0
      %v1453 = vadd.f32 0.0, %v1452
      %v1454 = vpop.f32.mrf.mxu0
      %v1455 = vpop.f32.mrf.mxu0
      %1456 = vdwg.mxu0
      %v1457 = vadd.f32 %v1393, %v1451
      %v1458 = vadd.f32 %v1394, %v1453
      %1459 = vrot.lane.b32.xlu0 %v958, 111
      %v1460 = vpop.permute.xlu0 %1459
      %1461 = vrot.lane.b32.xlu0 %v959, 111
      %v1462 = vpop.permute.xlu0 %1461
      %v1463 = vsel %vm881, %v1460, %v1462
      %v1464 = vsel %vm881, %v1462, %v1460
      %v1465 = vmul.f32 %v1463, %v887
      %v1466 = vmul.f32 %v1464, %v891
      %s1467 = scalar_lea.vmem %s4, 32
      %v1468 = vld [vmem:[%s1467] sm:$0xf]
      %v1469 = vpack.c.bf16 %v1465, %v1465
      %v1470 = vpack.c.bf16 %v1466, %v1466
      %v1472 = vsel %vm354, %v1468, 0
      %v1475 = vsel %vm358, %v1469, 0
      %v1478 = vsel %vm358, %v1470, 0
      %1480 = vmatprep.subr.bf16.mxu0 0
      %1481 = vmatpush1.bf16.msra.mxu0 0
      %1482 = vmatprep.subr.bf16.mxu0 0
      %1483 = vmatpush1.bf16.msra.mxu0 0
      %1484 = vmatprep.subr.bf16.mxu0 0
      %1485 = vmatpush1.bf16.msra.mxu0 0
      %1486 = vmatprep.subr.bf16.mxu0 0
      %1487 = vmatpush1.bf16.msra.mxu0 0
      %1488 = vmatprep.subr.bf16.mxu0 0
      %1489 = vmatpush1.bf16.msra.mxu0 0
      %1490 = vmatprep.subr.bf16.mxu0 0
      %1491 = vmatpush1.bf16.msra.mxu0 0
      %1492 = vmatprep.subr.bf16.mxu0 0
      %1493 = vmatpush1.bf16.msra.mxu0 0
      %1494 = vmatprep.subr.bf16.mxu0 %v1478
      %1495 = vmatpush1.bf16.msra.mxu0 %v1475
      %1496 = vmatprep.subr.bf16.mxu0 0
      %1497 = vmatpush2.bf16.msra.mxu0 0
      %1498 = vmatprep.subr.bf16.mxu0 0
      %1499 = vmatpush2.bf16.msra.mxu0 0
      %1500 = vmatprep.subr.bf16.mxu0 0
      %1501 = vmatpush2.bf16.msra.mxu0 0
      %1502 = vmatprep.subr.bf16.mxu0 0
      %1503 = vmatpush2.bf16.msra.mxu0 0
      %1504 = vmatprep.subr.bf16.mxu0 0
      %1505 = vmatpush2.bf16.msra.mxu0 0
      %1506 = vmatprep.subr.bf16.mxu0 0
      %1507 = vmatpush2.bf16.msra.mxu0 0
      %1508 = vmatprep.subr.bf16.mxu0 0
      %1509 = vmatpush2.bf16.msra.mxu0 0
      %1510 = vmatprep.subr.bf16.mxu0 0
      %1511 = vmatpush2.bf16.msra.mxu0 0
      %1512 = vmatprep.mubr.bf16.mxu0 0
      %1513 = vmatmul.mubr.bf16.gmra.mxu0 %v1472
      %v1514 = vpop.f32.mrf.mxu0
      %v1515 = vadd.f32 0.0, %v1514
      %v1516 = vpop.f32.mrf.mxu0
      %v1517 = vadd.f32 0.0, %v1516
      %v1518 = vpop.f32.mrf.mxu0
      %v1519 = vpop.f32.mrf.mxu0
      %1520 = vdwg.mxu0
      %v1521 = vadd.f32 %v1457, %v1515
      %v1522 = vadd.f32 %v1458, %v1517
      %v1523 = vld [vmem:[%s5] sm:$0xff]
      %1525 = vset.pattern.permute.xlu0 0
      %1526 = vperm.xlu0 %1525, %v1523
      %v1527 = vpop.permute.xlu0 %1526
      %v1529 = vadd.f32 %v1521, %v1527
      %v1530 = vadd.f32 %v1522, %v1527
      %v1531 = vadd.f32 %v1529, %v1530
      %1532 = vadd.xlane.f32.xlu0 %v1531
      %v1533 = vpop.xlane.xlu0 %1532
      %v1534 = vrcp.pop 256.0
      %v1535 = vmul.f32 %v1533, %v1534
      %v1536 = vmax.f32 %v1529, %v1530
      %1537 = vmax.xlane.f32.xlu0 %v1536
      %v1538 = vpop.xlane.xlu0 %1537
      %vm1539 = vcmask 7168
      %v1540 = vsel %vm1539, %v1535, %v1538
      %v1541 = vpack.c.bf16 %v1540, %v1540
      %v1542 = vld [vmem:[%s6] sm:$0x1]
      %v1544 = vsel %vm354, %v1542, 0
      %v1547 = vsel %vm358, %v1541, 0
      %1549 = vmatprep.subr.bf16.mxu0 0
      %1550 = vmatpush1.bf16.msra.mxu0 0
      %1551 = vmatprep.subr.bf16.mxu0 0
      %1552 = vmatpush1.bf16.msra.mxu0 0
      %1553 = vmatprep.subr.bf16.mxu0 0
      %1554 = vmatpush1.bf16.msra.mxu0 0
      %1555 = vmatprep.subr.bf16.mxu0 0
      %1556 = vmatpush1.bf16.msra.mxu0 0
      %1557 = vmatprep.subr.bf16.mxu0 0
      %1558 = vmatpush1.bf16.msra.mxu0 0
      %1559 = vmatprep.subr.bf16.mxu0 0
      %1560 = vmatpush1.bf16.msra.mxu0 0
      %1561 = vmatprep.subr.bf16.mxu0 0
      %1562 = vmatpush1.bf16.msra.mxu0 0
      %1563 = vmatprep.subr.bf16.mxu0 0
      %1564 = vmatpush1.bf16.msra.mxu0 %v1547
      %1565 = vmatprep.subr.bf16.mxu0 0
      %1566 = vmatpush2.bf16.msra.mxu0 0
      %1567 = vmatprep.subr.bf16.mxu0 0
      %1568 = vmatpush2.bf16.msra.mxu0 0
      %1569 = vmatprep.subr.bf16.mxu0 0
      %1570 = vmatpush2.bf16.msra.mxu0 0
      %1571 = vmatprep.subr.bf16.mxu0 0
      %1572 = vmatpush2.bf16.msra.mxu0 0
      %1573 = vmatprep.subr.bf16.mxu0 0
      %1574 = vmatpush2.bf16.msra.mxu0 0
      %1575 = vmatprep.subr.bf16.mxu0 0
      %1576 = vmatpush2.bf16.msra.mxu0 0
      %1577 = vmatprep.subr.bf16.mxu0 0
      %1578 = vmatpush2.bf16.msra.mxu0 0
      %1579 = vmatprep.subr.bf16.mxu0 0
      %1580 = vmatpush2.bf16.msra.mxu0 0
      %1581 = vmatprep.mubr.bf16.mxu0 0
      %1582 = vmatmul.mubr.bf16.gmra.mxu0 %v1544
      %v1583 = vpop.f32.mrf.mxu0
      %v1584 = vadd.f32 0.0, %v1583
      %v1585 = vpop.f32.mrf.mxu0
      %v1586 = vpop.f32.mrf.mxu0
      %v1587 = vpop.f32.mrf.mxu0
      %1588 = vdwg.mxu0
      %v1589 = vmax.f32 %v1584, 0.0
      %v1590 = vpack.c.bf16 %v1589, %v1589
      %v1591 = vld [vmem:[%s7] sm:$0xf]
      %vm1592 = vcmask 15360
      %v1594 = vsel %vm1592, %v1591, 0
      %vm1596 = vcmask 1040384
      %v1598 = vsel %vm1596, %v1590, 0
      %1600 = vmatprep.subr.bf16.mxu0 0
      %1601 = vmatpush1.bf16.msra.mxu0 0
      %1602 = vmatprep.subr.bf16.mxu0 0
      %1603 = vmatpush1.bf16.msra.mxu0 0
      %1604 = vmatprep.subr.bf16.mxu0 0
      %1605 = vmatpush1.bf16.msra.mxu0 0
      %1606 = vmatprep.subr.bf16.mxu0 0
      %1607 = vmatpush1.bf16.msra.mxu0 0
      %1608 = vmatprep.subr.bf16.mxu0 0
      %1609 = vmatpush1.bf16.msra.mxu0 0
      %1610 = vmatprep.subr.bf16.mxu0 0
      %1611 = vmatpush1.bf16.msra.mxu0 0
      %1612 = vmatprep.subr.bf16.mxu0 0
      %1613 = vmatpush1.bf16.msra.mxu0 0
      %1614 = vmatprep.subr.bf16.mxu0 0
      %1615 = vmatpush1.bf16.msra.mxu0 %v1598
      %1616 = vmatprep.subr.bf16.mxu0 0
      %1617 = vmatpush2.bf16.msra.mxu0 0
      %1618 = vmatprep.subr.bf16.mxu0 0
      %1619 = vmatpush2.bf16.msra.mxu0 0
      %1620 = vmatprep.subr.bf16.mxu0 0
      %1621 = vmatpush2.bf16.msra.mxu0 0
      %1622 = vmatprep.subr.bf16.mxu0 0
      %1623 = vmatpush2.bf16.msra.mxu0 0
      %1624 = vmatprep.subr.bf16.mxu0 0
      %1625 = vmatpush2.bf16.msra.mxu0 0
      %1626 = vmatprep.subr.bf16.mxu0 0
      %1627 = vmatpush2.bf16.msra.mxu0 0
      %1628 = vmatprep.subr.bf16.mxu0 0
      %1629 = vmatpush2.bf16.msra.mxu0 0
      %1630 = vmatprep.subr.bf16.mxu0 0
      %1631 = vmatpush2.bf16.msra.mxu0 0
      %1632 = vmatprep.mubr.bf16.mxu0 0
      %1633 = vmatmul.mubr.bf16.gmra.mxu0 %v1594
      %v1634 = vpop.f32.mrf.mxu0
      %v1635 = vadd.f32 0.0, %v1634
      %v1636 = vpop.f32.mrf.mxu0
      %v1637 = vpop.f32.mrf.mxu0
      %v1638 = vpop.f32.mrf.mxu0
      %1639 = vdwg.mxu0
      %1641 = vrot.lane.b32.xlu0 %v1635, 127
      %v1642 = vpop.permute.xlu0 %1641
      %v1644 = vadd.f32 %v1635, %v1642
      %v1645 = vxor.u32 %v1644, 2147483648
      %v1646 = vmul.f32 %v1645, 1.442695
      %v1647 = vpow.pop %v1646
      %v1648 = vadd.f32 %v1647, 1.0
      %v1649 = vrcp.pop %v1648
      %v1650 = vmul.f32 1.0, %v1649
      %1652 = vset.pattern.permute.xlu0 0
      %1653 = vperm.xlu0 %1652, %v1650
      %v1654 = vpop.permute.xlu0 %1653
      %v1656 = vmul.f32 %v1529, %v1654
      %v1657 = vmul.f32 %v1530, %v1654
      %v1658 = vadd.f32 %v1656, %v307
      %v1659 = vadd.f32 %v1657, %v308
      %v1660 = vmax.f32 %v1658, 0.0
      %v1661 = vmax.f32 %v1659, 0.0
      %1662 = vst [vmem:[%s305] sm:$0xff] %v1660
      %1663 = vst [vmem:[%s305 + $0x8] sm:$0xff] %v1661
      %p1664 = scmp.lt.s32.totalorder %s19, 1
      %s1665 = scalar_select %p1664, %s19, 1
      %s1666 = smul.addr %s1665, 2
      %s1667 = smul.addr %s1666, 8
      %s1668 = scalar_lea.vmem %s8, %s1667
      // Predicated region
      $region53: #{res_block_forward.1} parent=51 // pred_check
        %p1669 = pneg %p210
      $region54: #{res_block_forward.1} parent=51 // pred_check_branch
        %1671 = sbr.rel (%p1669) target = $region56
      $region55: #{res_block_forward.1} parent=51 // pred_region
        _
      $region56: #{res_block_forward.1} parent=51 // pred_fallthru
        _
    $region52: #{res_block_forward.1} parent=5 // pred_fallthru
      _
    %p1672 = scmp.le.s32.totalorder 2, %s14
    // Predicated region
    $region57: #{res_block_forward.1} parent=5 // pred_check
      %p1673 = pneg %p1672
    $region58: #{res_block_forward.1} parent=5 // pred_check_branch
      %1675 = sbr.rel (%p1673) target = $region60
    $region59: #{res_block_forward.1} parent=5 // pred_region
      %s1676 = ssub.s32 %s14, 2
      // Predicated region
      $region61: #{res_block_forward.1} parent=59 // pred_check
        %p1677 = pneg %p216
      $region62: #{res_block_forward.1} parent=59 // pred_check_branch
        %1679 = sbr.rel (%p1677) target = $region64
      $region63: #{res_block_forward.1} parent=59 // pred_region
        %p1680 = scmp.lt.s32.totalorder %s20, 1
        %s1681 = scalar_select %p1680, %s20, 1
        %s1682 = smul.addr %s1681, 2
        %s1683 = smul.addr %s1682, 8
        %s1684 = scalar_lea.vmem %s8, %s1683
      $region64: #{res_block_forward.1} parent=59 // pred_fallthru
        _
    $region60: #{res_block_forward.1} parent=5 // pred_fallthru
      _
  $region6: #{res_block_forward.1} parent=0 // loop_footer
    %s18 = sadd.s32 1, %s14
  $region7: #{res_block_forward.1} parent=0 // loop_footer_branch
    %13 = sbr.rel target = $region3
  $region8: #{res_block_forward.1} parent=0 // loop_exit
    _

</llo_original>
